<compile_context>
chip_gen: v5e
topology: v5e:2x2
jax: 0.10.0
libtpu: 0.0.40
codegen_flags: <defaults>
</compile_context>

<pallas_src>
import jax
import jax.numpy as jnp
from jax import lax
from jax.experimental import pallas as pl
from jax.experimental.pallas import tpu as pltpu

EPS = 1e-5
_SMALL_SPATIAL_ROWS = 512          # HoWo below this -> fully unrolled 27C path
_BUF1_OK = None                    # cached result of the pl.Buffered(1) probe


# --------------------------------- helpers ------------------------------------

def _round_up(v, m):
    return ((v + m - 1) // m) * m


def _vmem_capacity_bytes():
    try:
        return int(pltpu.get_tpu_info().vmem_capacity_bytes)
    except Exception:
        return 64 * 1024 * 1024    # conservative: v7x per-TensorCore capacity


def _buffered_one_supported():
    """Probe once whether BlockSpec(..., pipeline_mode=pl.Buffered(1)) works here."""
    global _BUF1_OK
    if _BUF1_OK is not None:
        return _BUF1_OK
    ok = False
    if hasattr(pl, "Buffered"):
        try:
            def _k(x_ref, o_ref):
                o_ref[...] = x_ref[...]
            with jax.ensure_compile_time_eval():
                spec = pl.BlockSpec((8, 128), lambda i: (0, 0),
                                    pipeline_mode=pl.Buffered(1))
                out = pl.pallas_call(
                    _k,
                    out_shape=jax.ShapeDtypeStruct((8, 128), jnp.float32),
                    grid=(1,),
                    in_specs=[spec],
                    out_specs=pl.BlockSpec((8, 128), lambda i: (0, 0)),
                )(jnp.zeros((8, 128), jnp.float32))
                jax.block_until_ready(out)
            ok = True
        except Exception:
            ok = False
    _BUF1_OK = ok
    return ok


def _const_spec(block_shape, index_map):
    """BlockSpec for an operand whose block never changes (single-buffered if possible)."""
    if _buffered_one_supported():
        return pl.BlockSpec(block_shape, index_map, pipeline_mode=pl.Buffered(1))
    return pl.BlockSpec(block_shape, index_map)


def _pick_row_tile(rows, k_row_bytes, out_row_bytes, acc_row_bytes, resident_bytes):
    """Largest row tile whose double-buffered step + resident operands fit the budget."""
    budget = int(0.4 * _vmem_capacity_bytes())
    tr = 8
    for cand in (2048, 1024, 512, 256, 128, 64, 32, 16, 8):
        step = cand * (2 * k_row_bytes + 2 * out_row_bytes + acc_row_bytes)
        if resident_bytes + step <= budget:
            tr = cand
            break
    return max(8, min(tr, _round_up(rows, 8)))


# --------------------------- BN batch statistics ------------------------------

def _bn_stats_kernel(x_ref, sum_ref, sq_ref):
    @pl.when(pl.program_id(1) == 0)
    def _init():
        sum_ref[...] = jnp.zeros_like(sum_ref)
        sq_ref[...] = jnp.zeros_like(sq_ref)

    x = x_ref[...]
    sum_ref[...] += jnp.sum(x, axis=0, keepdims=True)
    sq_ref[...] += jnp.sum(x * x, axis=0, keepdims=True)


def _bn_batch_stats(xt):
    """Per-channel (sum, sum_sq, count) of a channels-last tensor, f32 accumulation."""
    C = xt.shape[-1]
    count = xt.size // C
    flat = xt.reshape(-1, C).astype(jnp.float32)

    if C % 128 == 0:                 # channels already lane-dense
        view, L, fold = flat, C, 1
    elif 128 % C == 0:               # pack 128 // C positions per vreg row
        L, fold = 128, 128 // C
        total = flat.size
        tpad = _round_up(total, L)
        view = jnp.pad(flat.reshape(-1), (0, tpad - total)).reshape(-1, L)
    else:                            # lane-sparse fallback, still correct
        view, L, fold = flat, C, 1

    R = view.shape[0]
    # 2-way leading 'parallel' axis (lane-stacked partials) so a 2-TC chip shares
    # the HBM read; only when L is lane-aligned so the (1, L) output blocks are legal.
    ncores = 2 if (L % 128 == 0) else 1
    TR = min(1024, _round_up(pl.cdiv(R, ncores), 8))
    Rp = _round_up(R, ncores * TR)
    if Rp != R:
        view = jnp.pad(view, ((0, Rp - R), (0, 0)))   # zero rows don't change sums
    blocks_per_core = Rp // TR // ncores

    s, ss = pl.pallas_call(
        _bn_stats_kernel,
        out_shape=(jax.ShapeDtypeStruct((1, ncores * L), jnp.float32),
                   jax.ShapeDtypeStruct((1, ncores * L), jnp.float32)),
        grid=(ncores, blocks_per_core),
        in_specs=[pl.BlockSpec((TR, L), lambda c, i: (c * blocks_per_core + i, 0))],
        out_specs=(pl.BlockSpec((1, L), lambda c, i: (0, c)),
                   pl.BlockSpec((1, L), lambda c, i: (0, c))),
        compiler_params=pltpu.CompilerParams(
            dimension_semantics=("parallel", "arbitrary")),
    )(view)

    s = s.reshape(ncores, L).sum(axis=0)
    ss = ss.reshape(ncores, L).sum(axis=0)
    if fold > 1:
        s = s.reshape(fold, C).sum(axis=0)
        ss = ss.reshape(fold, C).sum(axis=0)
    return s, ss, count


# -------- fused (BN affine + PReLU) -> Conv3d(k3, s2, p1), small-spatial path ---------
# All 27 taps folded into one K = 27*C contraction; grid is a flat row loop.

def _make_conv27_kernel(tr, rows_per_sample, howo, wo, compute_dtype):
    def kernel(tap_ref, w_ref, b_ref, scale_ref, shift_ref, alpha_ref,
               d0c_ref, h0c_ref, w0c_ref, o_ref):
        x = tap_ref[...].astype(jnp.float32)                  # (TR, 27C)
        y = x * scale_ref[...] + shift_ref[...]               # BatchNorm affine
        y = jnp.where(y >= 0.0, y, alpha_ref[...] * y)        # PReLU
        # The module zero-pads AFTER BN+PReLU, so tap chunks that read the conv's
        # zero padding must contribute exactly zero -> mask them out.
        gr = pl.program_id(0) * tr + lax.broadcasted_iota(jnp.int32, (tr, 1), 0)
        rs = gr % rows_per_sample
        d0 = (rs < howo).astype(jnp.float32)                  # do == 0 rows
        h0 = ((rs % howo) < wo).astype(jnp.float32)           # ho == 0 rows
        w0 = ((rs % wo) == 0).astype(jnp.float32)             # wo == 0 rows
        zero = d0 * d0c_ref[...] + h0 * h0c_ref[...] + w0 * w0c_ref[...]
        y = jnp.where(zero > 0.0, 0.0, y)
        out = jnp.dot(y.astype(compute_dtype), w_ref[...],
                      preferred_element_type=jnp.float32)     # (TR, Cpad)
        o_ref[...] = (out + b_ref[...]).astype(o_ref.dtype)
    return kernel


def _conv3d_s2_im2col27(xt, w, b, scale, shift, alpha, compute_dtype):
    N, D, H, W, C = xt.shape
    Cout = w.shape[0]
    Do, Ho, Wo = D // 2, H // 2, W // 2
    KC = 27 * C
    Cpad = _round_up(Cout, 128)
    rows = N * Do * Ho * Wo

    # single fused gather of the 27 stride-2 taps (bf16), concatenated along channels
    xp = jnp.pad(xt, ((0, 0), (1, 1), (1, 1), (1, 1), (0, 0)))
    taps = [xp[:, kd:kd + 2 * Do - 1:2, kh:kh + 2 * Ho - 1:2, kw:kw + 2 * Wo - 1:2, :]
            for kd in range(3) for kh in range(3) for kw in range(3)]
    tap = jnp.concatenate(taps, axis=-1).reshape(rows, KC)

    itm = jnp.dtype(compute_dtype).itemsize
    resident = KC * Cpad * itm + Cpad * 4 + 6 * KC * 4          # weights + constants
    TR = _pick_row_tile(rows, KC * itm, Cpad * itm, 0, resident)
    rows_p = _round_up(rows, TR)
    if rows_p != rows:
        tap = jnp.pad(tap, ((0, rows_p - rows), (0, 0)))        # padded rows discarded

    # weights (Cout, Cin, kd, kh, kw) -> (27C, Cout), lane-padded Cout, bf16
    w_mat = jnp.transpose(w, (2, 3, 4, 1, 0)).reshape(KC, Cout)
    w_mat = jnp.pad(w_mat, ((0, 0), (0, Cpad - Cout))).astype(compute_dtype)
    b_row = jnp.pad(b.astype(jnp.float32), (0, Cpad - Cout)).reshape(1, Cpad)

    # BN / PReLU / pad-mask vectors pre-tiled ONCE to the 27C axis (no per-tap broadcasts)
    scale27 = jnp.tile(scale, 27).reshape(1, KC)
    shift27 = jnp.tile(shift, 27).reshape(1, KC)
    alpha27 = jnp.tile(alpha, 27).reshape(1, KC)
    chunk = jnp.arange(27)
    d0c = jnp.repeat((chunk // 9 == 0).astype(jnp.float32), C).reshape(1, KC)
    h0c = jnp.repeat(((chunk // 3) % 3 == 0).astype(jnp.float32), C).reshape(1, KC)
    w0c = jnp.repeat((chunk % 3 == 0).astype(jnp.float32), C).reshape(1, KC)

    const2 = lambda r: (0, 0)
    out = pl.pallas_call(
        _make_conv27_kernel(TR, Do * Ho * Wo, Ho * Wo, Wo, compute_dtype),
        out_shape=jax.ShapeDtypeStruct((rows_p, Cpad), compute_dtype),
        grid=(rows_p // TR,),
        in_specs=[pl.BlockSpec((TR, KC), lambda r: (r, 0)),
                  _const_spec((KC, Cpad), const2),      # weights (resident)
                  _const_spec((1, Cpad), const2),       # bias
                  _const_spec((1, KC), const2),         # BN scale
                  _const_spec((1, KC), const2),         # BN shift
                  _const_spec((1, KC), const2),         # PReLU slope
                  _const_spec((1, KC), const2),         # depth-pad chunk mask
                  _const_spec((1, KC), const2),         # height-pad chunk mask
                  _const_spec((1, KC), const2)],        # width-pad chunk mask
        out_specs=pl.BlockSpec((TR, Cpad), lambda r: (r, 0)),
        compiler_params=pltpu.CompilerParams(
            dimension_semantics=("parallel",),
            vmem_limit_bytes=int(0.75 * _vmem_capacity_bytes())),
    )(tap, w_mat, b_row, scale27, shift27, alpha27, d0c, h0c, w0c)

    return out[:rows, :Cout].reshape(N, Do, Ho, Wo, Cout)


# -------- fused (BN affine + PReLU) -> Conv3d(k3, s2, p1), large-spatial path ---------
# Nine (kh,kw) taps folded into K = 9*C; depth taps reduced over a 3-step grid axis
# whose tap block is selected by the index_map (depth slab = 2*do + kd).

def _make_conv9_kernel(tr, do_dim, wo, compute_dtype):
    def kernel(tap_ref, w_ref, b_ref, scale_ref, shift_ref, alpha_ref,
               h0c_ref, w0c_ref, o_ref, acc_ref):
        m = pl.program_id(0)
        r = pl.program_id(1)
        kd = pl.program_id(2)
        do = m % do_dim

        @pl.when(kd == 0)
        def _init():
            acc_ref[...] = jnp.zeros_like(acc_ref)

        # depth index 2*do + kd == 0 is the conv's zero-pad slab; the module pads AFTER
        # BN+PReLU so that slab must contribute nothing -> skip its compute entirely.
        @pl.when(jnp.logical_or(kd > 0, do > 0))
        def _accumulate():
            x = tap_ref[...].astype(jnp.float32)               # (TR, 9C)
            y = x * scale_ref[...] + shift_ref[...]            # BatchNorm affine
            y = jnp.where(y >= 0.0, y, alpha_ref[...] * y)     # PReLU
            gr = r * tr + lax.broadcasted_iota(jnp.int32, (tr, 1), 0)
            h0 = (gr < wo).astype(jnp.float32)                 # ho == 0 rows
            w0 = ((gr % wo) == 0).astype(jnp.float32)          # wo == 0 rows
            zero = h0 * h0c_ref[...] + w0 * w0c_ref[...]
            y = jnp.where(zero > 0.0, 0.0, y)
            acc_ref[...] += jnp.dot(y.astype(compute_dtype), w_ref[kd],
                                    preferred_element_type=jnp.float32)

        @pl.when(kd == pl.num_programs(2) - 1)
        def _finalize():
            o_ref[...] = (acc_ref[...] + b_ref[...]).astype(o_ref.dtype)
    return kernel


def _conv3d_s2_tap9(xt, w, b, scale, shift, alpha, compute_dtype):
    N, D, H, W, C = xt.shape
    Cout = w.shape[0]
    Do, Ho, Wo = D // 2, H // 2, W // 2
    Dp = D + 2
    HoWo = Ho * Wo
    KC = 9 * C
    Cpad = _round_up(Cout, 128)

    # single fused gather of the nine (kh,kw) stride-2 taps (bf16); depth not expanded
    xp = jnp.pad(xt, ((0, 0), (1, 1), (1, 1), (1, 1), (0, 0)))
    taps = [xp[:, :, kh:kh + 2 * Ho - 1:2, kw:kw + 2 * Wo - 1:2, :]
            for kh in range(3) for kw in range(3)]
    tap = jnp.concatenate(taps, axis=-1).reshape(N, Dp, HoWo, KC)

    itm = jnp.dtype(compute_dtype).itemsize
    resident = 3 * KC * Cpad * itm + Cpad * 4 + 4 * KC * 4      # weights + constants
    TR = _pick_row_tile(HoWo, KC * itm, Cpad * itm, Cpad * 4, resident)
    HoWo_p = _round_up(HoWo, TR)
    if HoWo_p != HoWo:
        tap = jnp.pad(tap, ((0, 0), (0, 0), (0, HoWo_p - HoWo), (0, 0)))

    # weights (Cout, Cin, kd, kh, kw) -> (3, 9C, Cout), lane-padded Cout, bf16
    w_mat = jnp.transpose(w, (2, 3, 4, 1, 0)).reshape(3, KC, Cout)
    w_mat = jnp.pad(w_mat, ((0, 0), (0, 0), (0, Cpad - Cout))).astype(compute_dtype)
    b_row = jnp.pad(b.astype(jnp.float32), (0, Cpad - Cout)).reshape(1, Cpad)

    scale9 = jnp.tile(scale, 9).reshape(1, KC)
    shift9 = jnp.tile(shift, 9).reshape(1, KC)
    alpha9 = jnp.tile(alpha, 9).reshape(1, KC)
    chunk = jnp.arange(9)
    h0c = jnp.repeat((chunk // 3 == 0).astype(jnp.float32), C).reshape(1, KC)
    w0c = jnp.repeat((chunk % 3 == 0).astype(jnp.float32), C).reshape(1, KC)

    M0 = N * Do
    NR = HoWo_p // TR
    tap_spec = pl.BlockSpec(
        (None, None, TR, KC),
        lambda m, r, kd: (m // Do, 2 * (m % Do) + kd, r, 0))
    const2 = lambda m, r, kd: (0, 0)
    const3 = lambda m, r, kd: (0, 0, 0)

    out = pl.pallas_call(
        _make_conv9_kernel(TR, Do, Wo, compute_dtype),
        out_shape=jax.ShapeDtypeStruct((M0, HoWo_p, Cpad), compute_dtype),
        grid_spec=pltpu.PrefetchScalarGridSpec(
            num_scalar_prefetch=0,
            grid=(M0, NR, 3),
            in_specs=[tap_spec,
                      _const_spec((3, KC, Cpad), const3),   # weights (resident)
                      _const_spec((1, Cpad), const2),       # bias
                      _const_spec((1, KC), const2),         # BN scale
                      _const_spec((1, KC), const2),         # BN shift
                      _const_spec((1, KC), const2),         # PReLU slope
                      _const_spec((1, KC), const2),         # height-pad chunk mask
                      _const_spec((1, KC), const2)],        # width-pad chunk mask
            out_specs=pl.BlockSpec((None, TR, Cpad), lambda m, r, kd: (m, r, 0)),
            scratch_shapes=[pltpu.VMEM((TR, Cpad), jnp.float32)]),
        compiler_params=pltpu.CompilerParams(
            dimension_semantics=("parallel", "parallel", "arbitrary"),
            vmem_limit_bytes=int(0.75 * _vmem_capacity_bytes())),
    )(tap, w_mat, b_row, scale9, shift9, alpha9, h0c, w0c)

    return out[:, :HoWo, :Cout].reshape(N, Do, Ho, Wo, Cout)


def _conv3d_s2_fused(xt, w, b, scale, shift, alpha, compute_dtype):
    N, D, H, W, C = xt.shape
    assert D % 2 == 0 and H % 2 == 0 and W % 2 == 0, "even spatial sizes only"
    if (H // 2) * (W // 2) < _SMALL_SPATIAL_ROWS:
        return _conv3d_s2_im2col27(xt, w, b, scale, shift, alpha, compute_dtype)
    return _conv3d_s2_tap9(xt, w, b, scale, shift, alpha, compute_dtype)


# ------------------------------- forward pass ---------------------------------

def _downsample_forward(x, params, first_layer, compute_dtype):
    """x: (N, C, D, H, W) -> (N, Cout, D//2, H//2, W//2), like the PyTorch module."""
    N, C, D, H, W = x.shape
    xt = jnp.transpose(x, (0, 2, 3, 4, 1))                     # channels-last (input dtype)

    if first_layer:
        scale = jnp.ones((C,), jnp.float32)
        shift = jnp.zeros((C,), jnp.float32)
        alpha = jnp.ones((C,), jnp.float32)                    # identity activation
    else:
        s, ss, count = _bn_batch_stats(xt)
        mean = s / count
        var = jnp.maximum(ss / count - mean * mean, 0.0)       # biased var (training BN)
        # TODO(synk): for very large counts a shifted / two-pass variance is numerically
        #             safer than E[x^2] - E[x]^2.
        inv = lax.rsqrt(var + EPS)
        scale = params["gamma"].astype(jnp.float32) * inv
        shift = params["beta"].astype(jnp.float32) - mean * scale
        # supports both nn.PReLU() (single shared slope) and nn.PReLU(C)
        alpha = jnp.broadcast_to(params["alpha"].astype(jnp.float32).reshape(-1), (C,))

    out = _conv3d_s2_fused(xt.astype(compute_dtype), params["w"], params["b"],
                           scale, shift, alpha, compute_dtype)  # (N,Do,Ho,Wo,Cout)
    return jnp.transpose(out, (0, 4, 1, 2, 3))                  # NCDHW


_downsample_forward_jit = jax.jit(
    _downsample_forward, static_argnames=("first_layer", "compute_dtype"))


def downsample_forward(x, params, first_layer=False, compute_dtype=jnp.bfloat16):
    _buffered_one_supported()           # run the pl.Buffered(1) probe outside any trace
    return _downsample_forward_jit(x, params, first_layer=first_layer,
                                   compute_dtype=compute_dtype)


# -------------------------------- reference -----------------------------------

def ref_forward(x, params, first_layer=False):
    C = x.shape[1]
    y = x
    if not first_layer:
        mean = jnp.mean(x, axis=(0, 2, 3, 4), keepdims=True)
        var = jnp.mean((x - mean) ** 2, axis=(0, 2, 3, 4), keepdims=True)
        g = params["gamma"].reshape(1, -1, 1, 1, 1)
        b = params["beta"].reshape(1, -1, 1, 1, 1)
        y = g * (x - mean) * lax.rsqrt(var + EPS) + b
        a = jnp.broadcast_to(params["alpha"].reshape(-1), (C,)).reshape(1, -1, 1, 1, 1)
        y = jnp.where(y >= 0, y, a * y)
    out = lax.conv_general_dilated(
        y, params["w"], window_strides=(2, 2, 2), padding=[(1, 1)] * 3,
        dimension_numbers=("NCDHW", "OIDHW", "NCDHW"),
        precision=lax.Precision.HIGHEST)
    return out + params["b"].reshape(1, -1, 1, 1, 1)


def _make_params(key, cin, cout):
    k1, k2, k3, k4 = jax.random.split(key, 4)
    return {
        "w": 0.1 * jax.random.normal(k1, (cout, cin, 3, 3, 3), dtype=jnp.float32),
        "b": 0.1 * jax.random.normal(k2, (cout,), dtype=jnp.float32),
        "gamma": 1.0 + 0.1 * jax.random.normal(k3, (cin,), dtype=jnp.float32),
        "beta": 0.1 * jax.random.normal(k4, (cin,), dtype=jnp.float32),
        "alpha": 0.25 * jnp.ones((1,), dtype=jnp.float32),      # PReLU default init
    }


# ---------------------------------- main ---------------------------------------

if __name__ == "__main__":
    key = jax.random.PRNGKey(0)
    kx1, kp1, kx2, kp2 = jax.random.split(key, 4)

    # 1) small spatial size -> fully unrolled 27C path (single-dot kernel)
    N, Cin, Cout, D, H, W = 2, 4, 8, 8, 8, 8
    x1 = jax.random.normal(kx1, (N, Cin, D, H, W), dtype=jnp.float32)
    p1 = _make_params(kp1, Cin, Cout)
    out1 = jax.block_until_ready(
        downsample_forward(x1, p1, first_layer=False, compute_dtype=jnp.bfloat16))
    ref1 = ref_forward(x1, p1, first_layer=False)
    assert out1.shape == (N, Cout, D // 2, H // 2, W // 2), out1.shape
    err1 = float(jnp.max(jnp.abs(out1.astype(jnp.float32) - ref1)))

    # 2) larger spatial size -> 9C tap stream with the kd-reduction grid axis
    N2, Cin2, Cout2, D2, H2, W2 = 1, 4, 8, 8, 48, 48
    x2 = jax.random.normal(kx2, (N2, Cin2, D2, H2, W2), dtype=jnp.float32)
    p2 = _make_params(kp2, Cin2, Cout2)
    out2 = jax.block_until_ready(
        downsample_forward(x2, p2, first_layer=False, compute_dtype=jnp.bfloat16))
    ref2 = ref_forward(x2, p2, first_layer=False)
    assert out2.shape == (N2, Cout2, D2 // 2, H2 // 2, W2 // 2), out2.shape
    err2 = float(jnp.max(jnp.abs(out2.astype(jnp.float32) - ref2)))

    # bf16 taps + bf16 MXU inputs + bf16 output, f32 accumulation -> few e-2 of noise
    assert err1 < 5e-2, err1
    assert err2 < 5e-2, err2
    print("KERNEL_OK")
</pallas_src>

<mosaic_0001>
module attributes {stable_mosaic.version = 11 : i64} {
  func.func @_k(%arg0: i32, %arg1: memref<8x128xf32, #tpu.memory_space<vmem>>, %arg2: memref<8x128xf32, #tpu.memory_space<vmem>>) attributes {dimension_semantics = [#tpu.dimension_semantics<arbitrary>], iteration_bounds = array<i64: 1>, scalar_prefetch = 0 : i64, scratch_operands = 0 : i64, tpu.core_type = #tpu.core_type<tc>, window_params = [{pipeline_mode = #tpu.pipeline_mode<synchronous>, transform_indices = @transform_0, window_bounds = array<i64: 8, 128>}, {pipeline_mode = #tpu.pipeline_mode<synchronous>, transform_indices = @transform_1, window_bounds = array<i64: 8, 128>}]} {
    %c0 = arith.constant 0 : index
    %c0_0 = arith.constant 0 : index
    %0 = vector.load %arg1[%c0, %c0_0] : memref<8x128xf32, #tpu.memory_space<vmem>>, vector<8x128xf32>
    %c0_1 = arith.constant 0 : index
    %c0_2 = arith.constant 0 : index
    %1 = vector.load %arg2[%c0_1, %c0_2] : memref<8x128xf32, #tpu.memory_space<vmem>>, vector<8x128xf32>
    tpu.vector_store %arg2[%c0_1, %c0_2], %0 {strides = array<i32>} : memref<8x128xf32, #tpu.memory_space<vmem>>, vector<8x128xf32>,
    return
  }
  func.func @transform_0(%arg0: i32) -> (i32, i32) {
    %c0_i32 = arith.constant 0 : i32
    %c0_i32_0 = arith.constant 0 : i32
    %c0_i32_1 = arith.constant 0 : i32
    return %c0_i32, %c0_i32_0 : i32, i32
  }
  func.func @transform_1(%arg0: i32) -> (i32, i32) {
    %c0_i32 = arith.constant 0 : i32
    %c0_i32_0 = arith.constant 0 : i32
    %c0_i32_1 = arith.constant 0 : i32
    return %c0_i32, %c0_i32_0 : i32, i32
  }
}

module attributes {stable_mosaic.version = 11 : i64} {
  func.func @_bn_stats_kernel(%arg0: i32, %arg1: i32, %arg2: memref<16x128xf32, #tpu.memory_space<vmem>>, %arg3: memref<1x128xf32, #tpu.memory_space<vmem>>, %arg4: memref<1x128xf32, #tpu.memory_space<vmem>>) attributes {dimension_semantics = [#tpu.dimension_semantics<parallel>, #tpu.dimension_semantics<arbitrary>], iteration_bounds = array<i64: 2, 1>, scalar_prefetch = 0 : i64, scratch_operands = 0 : i64, tpu.core_type = #tpu.core_type<tc>, window_params = [{transform_indices = @transform_0, window_bounds = array<i64: 16, 128>}, {transform_indices = @transform_1, window_bounds = array<i64: 1, 128>}, {transform_indices = @transform_2, window_bounds = array<i64: 1, 128>}]} {
    %c0_i32 = arith.constant 0 : i32
    %0 = arith.cmpi eq, %arg1, %c0_i32 : i32
    %1 = arith.extui %0 : i1 to i32
    %c0_i32_0 = arith.constant 0 : i32
    %2 = arith.cmpi ne, %1, %c0_i32_0 : i32
    scf.if %2 {
      %cst_11 = arith.constant 0.000000e+00 : f32
      %15 = vector.broadcast %cst_11 : f32 to vector<1x128xf32>
      %c0_12 = arith.constant 0 : index
      %c0_13 = arith.constant 0 : index
      %16 = vector.load %arg3[%c0_12, %c0_13] : memref<1x128xf32, #tpu.memory_space<vmem>>, vector<1x128xf32>
      tpu.vector_store %arg3[%c0_12, %c0_13], %15 {strides = array<i32>} : memref<1x128xf32, #tpu.memory_space<vmem>>, vector<1x128xf32>,
      %cst_14 = arith.constant 0.000000e+00 : f32
      %17 = vector.broadcast %cst_14 : f32 to vector<1x128xf32>
      %c0_15 = arith.constant 0 : index
      %c0_16 = arith.constant 0 : index
      %18 = vector.load %arg4[%c0_15, %c0_16] : memref<1x128xf32, #tpu.memory_space<vmem>>, vector<1x128xf32>
      tpu.vector_store %arg4[%c0_15, %c0_16], %17 {strides = array<i32>} : memref<1x128xf32, #tpu.memory_space<vmem>>, vector<1x128xf32>,
    } else {
    }
    %c0 = arith.constant 0 : index
    %c0_1 = arith.constant 0 : index
    %3 = vector.load %arg2[%c0, %c0_1] : memref<16x128xf32, #tpu.memory_space<vmem>>, vector<16x128xf32>
    %c0_2 = arith.constant 0 : index
    %c0_3 = arith.constant 0 : index
    %4 = vector.load %arg3[%c0_2, %c0_3] : memref<1x128xf32, #tpu.memory_space<vmem>>, vector<1x128xf32>
    %cst = arith.constant dense<0.000000e+00> : vector<128xf32>
    %5 = vector.multi_reduction <add>, %3, %cst [0] : vector<16x128xf32> to vector<128xf32>
    %6 = vector.shape_cast %5 : vector<128xf32> to vector<1x128xf32>
    %7 = arith.addf %4, %6 : vector<1x128xf32>
    %c0_4 = arith.constant 0 : index
    %c0_5 = arith.constant 0 : index
    %8 = vector.load %arg3[%c0_4, %c0_5] : memref<1x128xf32, #tpu.memory_space<vmem>>, vector<1x128xf32>
    tpu.vector_store %arg3[%c0_4, %c0_5], %7 {strides = array<i32>} : memref<1x128xf32, #tpu.memory_space<vmem>>, vector<1x128xf32>,
    %c0_6 = arith.constant 0 : index
    %c0_7 = arith.constant 0 : index
    %9 = vector.load %arg4[%c0_6, %c0_7] : memref<1x128xf32, #tpu.memory_space<vmem>>, vector<1x128xf32>
    %10 = arith.mulf %3, %3 : vector<16x128xf32>
    %cst_8 = arith.constant dense<0.000000e+00> : vector<128xf32>
    %11 = vector.multi_reduction <add>, %10, %cst_8 [0] : vector<16x128xf32> to vector<128xf32>
    %12 = vector.shape_cast %11 : vector<128xf32> to vector<1x128xf32>
    %13 = arith.addf %9, %12 : vector<1x128xf32>
    %c0_9 = arith.constant 0 : index
    %c0_10 = arith.constant 0 : index
    %14 = vector.load %arg4[%c0_9, %c0_10] : memref<1x128xf32, #tpu.memory_space<vmem>>, vector<1x128xf32>
    tpu.vector_store %arg4[%c0_9, %c0_10], %13 {strides = array<i32>} : memref<1x128xf32, #tpu.memory_space<vmem>>, vector<1x128xf32>,
    return
  }
  func.func @transform_0(%arg0: i32, %arg1: i32) -> (i32, i32) {
    %c1_i32 = arith.constant 1 : i32
    %0 = arith.muli %arg0, %c1_i32 : i32
    %1 = arith.addi %0, %arg1 : i32
    %c0_i32 = arith.constant 0 : i32
    %c0_i32_0 = arith.constant 0 : i32
    return %1, %c0_i32 : i32, i32
  }
  func.func @transform_1(%arg0: i32, %arg1: i32) -> (i32, i32) {
    %c0_i32 = arith.constant 0 : i32
    %c0_i32_0 = arith.constant 0 : i32
    return %c0_i32, %arg0 : i32, i32
  }
  func.func @transform_2(%arg0: i32, %arg1: i32) -> (i32, i32) {
    %c0_i32 = arith.constant 0 : i32
    %c0_i32_0 = arith.constant 0 : i32
    return %c0_i32, %arg0 : i32, i32
  }
}

module attributes {stable_mosaic.version = 11 : i64} {
  func.func @kernel(%arg0: i32, %arg1: memref<128x108xbf16, #tpu.memory_space<vmem>>, %arg2: memref<108x128xbf16, #tpu.memory_space<vmem>>, %arg3: memref<1x128xf32, #tpu.memory_space<vmem>>, %arg4: memref<1x108xf32, #tpu.memory_space<vmem>>, %arg5: memref<1x108xf32, #tpu.memory_space<vmem>>, %arg6: memref<1x108xf32, #tpu.memory_space<vmem>>, %arg7: memref<1x108xf32, #tpu.memory_space<vmem>>, %arg8: memref<1x108xf32, #tpu.memory_space<vmem>>, %arg9: memref<1x108xf32, #tpu.memory_space<vmem>>, %arg10: memref<128x128xbf16, #tpu.memory_space<vmem>>) attributes {dimension_semantics = [#tpu.dimension_semantics<parallel>], iteration_bounds = array<i64: 1>, scalar_prefetch = 0 : i64, scratch_operands = 0 : i64, tpu.core_type = #tpu.core_type<tc>, window_params = [{transform_indices = @transform_0, window_bounds = array<i64: 128, 108>}, {pipeline_mode = #tpu.pipeline_mode<synchronous>, transform_indices = @transform_1, window_bounds = array<i64: 108, 128>}, {pipeline_mode = #tpu.pipeline_mode<synchronous>, transform_indices = @transform_2, window_bounds = array<i64: 1, 128>}, {pipeline_mode = #tpu.pipeline_mode<synchronous>, transform_indices = @transform_3, window_bounds = array<i64: 1, 108>}, {pipeline_mode = #tpu.pipeline_mode<synchronous>, transform_indices = @transform_4, window_bounds = array<i64: 1, 108>}, {pipeline_mode = #tpu.pipeline_mode<synchronous>, transform_indices = @transform_5, window_bounds = array<i64: 1, 108>}, {pipeline_mode = #tpu.pipeline_mode<synchronous>, transform_indices = @transform_6, window_bounds = array<i64: 1, 108>}, {pipeline_mode = #tpu.pipeline_mode<synchronous>, transform_indices = @transform_7, window_bounds = array<i64: 1, 108>}, {pipeline_mode = #tpu.pipeline_mode<synchronous>, transform_indices = @transform_8, window_bounds = array<i64: 1, 108>}, {transform_indices = @transform_9, window_bounds = array<i64: 128, 128>}]} {
    %c0 = arith.constant 0 : index
    %c0_0 = arith.constant 0 : index
    %0 = vector.load %arg1[%c0, %c0_0] : memref<128x108xbf16, #tpu.memory_space<vmem>>, vector<128x108xbf16>
    %1 = arith.extf %0 : vector<128x108xbf16> to vector<128x108xf32>
    %c0_1 = arith.constant 0 : index
    %c0_2 = arith.constant 0 : index
    %2 = vector.load %arg4[%c0_1, %c0_2] : memref<1x108xf32, #tpu.memory_space<vmem>>, vector<1x108xf32>
    %3 = vector.broadcast %2 : vector<1x108xf32> to vector<128x108xf32>
    %4 = arith.mulf %1, %3 : vector<128x108xf32>
    %c0_3 = arith.constant 0 : index
    %c0_4 = arith.constant 0 : index
    %5 = vector.load %arg5[%c0_3, %c0_4] : memref<1x108xf32, #tpu.memory_space<vmem>>, vector<1x108xf32>
    %6 = vector.broadcast %5 : vector<1x108xf32> to vector<128x108xf32>
    %7 = arith.addf %4, %6 : vector<128x108xf32>
    %cst = arith.constant 0.000000e+00 : f32
    %8 = vector.broadcast %cst : f32 to vector<128x108xf32>
    %9 = arith.cmpf oge, %7, %8 : vector<128x108xf32>
    %c0_5 = arith.constant 0 : index
    %c0_6 = arith.constant 0 : index
    %10 = vector.load %arg6[%c0_5, %c0_6] : memref<1x108xf32, #tpu.memory_space<vmem>>, vector<1x108xf32>
    %11 = vector.broadcast %10 : vector<1x108xf32> to vector<128x108xf32>
    %12 = arith.mulf %11, %7 : vector<128x108xf32>
    %13 = arith.select %9, %7, %12 : vector<128x108xi1>, vector<128x108xf32>
    %c128_i32 = arith.constant 128 : i32
    %14 = arith.muli %arg0, %c128_i32 : i32
    %15 = tpu.iota {dimensions = array<i32: 0>} : vector<128x1xi32>
    %16 = vector.broadcast %14 : i32 to vector<128x1xi32>
    %17 = arith.addi %16, %15 : vector<128x1xi32>
    %c64_i32 = arith.constant 64 : i32
    %c0_i32 = arith.constant 0 : i32
    %18 = arith.cmpi eq, %c64_i32, %c0_i32 : i32
    %c1_i32 = arith.constant 1 : i32
    %19 = arith.select %18, %c1_i32, %c64_i32 : i32
    %20 = vector.broadcast %19 : i32 to vector<128x1xi32>
    %21 = arith.remsi %17, %20 : vector<128x1xi32>
    %c0_i32_7 = arith.constant 0 : i32
    %22 = vector.broadcast %c0_i32_7 : i32 to vector<128x1xi32>
    %23 = arith.cmpi ne, %21, %22 : vector<128x1xi32>
    %c0_i32_8 = arith.constant 0 : i32
    %24 = vector.broadcast %c0_i32_8 : i32 to vector<128x1xi32>
    %25 = arith.cmpi slt, %21, %24 : vector<128x1xi32>
    %c0_i32_9 = arith.constant 0 : i32
    %26 = arith.cmpi slt, %19, %c0_i32_9 : i32
    %27 = vector.broadcast %26 : i1 to vector<128x1xi1>
    %28 = vector.broadcast %27 : vector<128x1xi1> to vector<128x1xi1>
    %29 = arith.xori %25, %28 : vector<128x1xi1>
    %30 = arith.andi %29, %23 : vector<128x1xi1>
    %31 = vector.broadcast %19 : i32 to vector<128x1xi32>
    %32 = arith.addi %21, %31 : vector<128x1xi32>
    %33 = arith.select %30, %32, %21 : vector<128x1xi1>, vector<128x1xi32>
    %c16_i32 = arith.constant 16 : i32
    %34 = vector.broadcast %c16_i32 : i32 to vector<128x1xi32>
    %35 = arith.cmpi slt, %33, %34 : vector<128x1xi32>
    %36 = arith.extui %35 : vector<128x1xi1> to vector<128x1xi32>
    %37 = arith.sitofp %36 : vector<128x1xi32> to vector<128x1xf32>
    %c16_i32_10 = arith.constant 16 : i32
    %c0_i32_11 = arith.constant 0 : i32
    %38 = arith.cmpi eq, %c16_i32_10, %c0_i32_11 : i32
    %c1_i32_12 = arith.constant 1 : i32
    %39 = arith.select %38, %c1_i32_12, %c16_i32_10 : i32
    %40 = vector.broadcast %39 : i32 to vector<128x1xi32>
    %41 = arith.remsi %33, %40 : vector<128x1xi32>
    %c0_i32_13 = arith.constant 0 : i32
    %42 = vector.broadcast %c0_i32_13 : i32 to vector<128x1xi32>
    %43 = arith.cmpi ne, %41, %42 : vector<128x1xi32>
    %c0_i32_14 = arith.constant 0 : i32
    %44 = vector.broadcast %c0_i32_14 : i32 to vector<128x1xi32>
    %45 = arith.cmpi slt, %41, %44 : vector<128x1xi32>
    %c0_i32_15 = arith.constant 0 : i32
    %46 = arith.cmpi slt, %39, %c0_i32_15 : i32
    %47 = vector.broadcast %46 : i1 to vector<128x1xi1>
    %48 = vector.broadcast %47 : vector<128x1xi1> to vector<128x1xi1>
    %49 = arith.xori %45, %48 : vector<128x1xi1>
    %50 = arith.andi %49, %43 : vector<128x1xi1>
    %51 = vector.broadcast %39 : i32 to vector<128x1xi32>
    %52 = arith.addi %41, %51 : vector<128x1xi32>
    %53 = arith.select %50, %52, %41 : vector<128x1xi1>, vector<128x1xi32>
    %c4_i32 = arith.constant 4 : i32
    %54 = vector.broadcast %c4_i32 : i32 to vector<128x1xi32>
    %55 = arith.cmpi slt, %53, %54 : vector<128x1xi32>
    %56 = arith.extui %55 : vector<128x1xi1> to vector<128x1xi32>
    %57 = arith.sitofp %56 : vector<128x1xi32> to vector<128x1xf32>
    %c4_i32_16 = arith.constant 4 : i32
    %c0_i32_17 = arith.constant 0 : i32
    %58 = arith.cmpi eq, %c4_i32_16, %c0_i32_17 : i32
    %c1_i32_18 = arith.constant 1 : i32
    %59 = arith.select %58, %c1_i32_18, %c4_i32_16 : i32
    %60 = vector.broadcast %59 : i32 to vector<128x1xi32>
    %61 = arith.remsi %33, %60 : vector<128x1xi32>
    %c0_i32_19 = arith.constant 0 : i32
    %62 = vector.broadcast %c0_i32_19 : i32 to vector<128x1xi32>
    %63 = arith.cmpi ne, %61, %62 : vector<128x1xi32>
    %c0_i32_20 = arith.constant 0 : i32
    %64 = vector.broadcast %c0_i32_20 : i32 to vector<128x1xi32>
    %65 = arith.cmpi slt, %61, %64 : vector<128x1xi32>
    %c0_i32_21 = arith.constant 0 : i32
    %66 = arith.cmpi slt, %59, %c0_i32_21 : i32
    %67 = vector.broadcast %66 : i1 to vector<128x1xi1>
    %68 = vector.broadcast %67 : vector<128x1xi1> to vector<128x1xi1>
    %69 = arith.xori %65, %68 : vector<128x1xi1>
    %70 = arith.andi %69, %63 : vector<128x1xi1>
    %71 = vector.broadcast %59 : i32 to vector<128x1xi32>
    %72 = arith.addi %61, %71 : vector<128x1xi32>
    %73 = arith.select %70, %72, %61 : vector<128x1xi1>, vector<128x1xi32>
    %c0_i32_22 = arith.constant 0 : i32
    %74 = vector.broadcast %c0_i32_22 : i32 to vector<128x1xi32>
    %75 = arith.cmpi eq, %73, %74 : vector<128x1xi32>
    %76 = arith.extui %75 : vector<128x1xi1> to vector<128x1xi32>
    %77 = arith.sitofp %76 : vector<128x1xi32> to vector<128x1xf32>
    %c0_23 = arith.constant 0 : index
    %c0_24 = arith.constant 0 : index
    %78 = vector.load %arg7[%c0_23, %c0_24] : memref<1x108xf32, #tpu.memory_space<vmem>>, vector<1x108xf32>
    %79 = vector.broadcast %37 : vector<128x1xf32> to vector<128x108xf32>
    %80 = vector.broadcast %78 : vector<1x108xf32> to vector<128x108xf32>
    %81 = arith.mulf %79, %80 : vector<128x108xf32>
    %c0_25 = arith.constant 0 : index
    %c0_26 = arith.constant 0 : index
    %82 = vector.load %arg8[%c0_25, %c0_26] : memref<1x108xf32, #tpu.memory_space<vmem>>, vector<1x108xf32>
    %83 = vector.broadcast %57 : vector<128x1xf32> to vector<128x108xf32>
    %84 = vector.broadcast %82 : vector<1x108xf32> to vector<128x108xf32>
    %85 = arith.mulf %83, %84 : vector<128x108xf32>
    %86 = arith.addf %81, %85 : vector<128x108xf32>
    %c0_27 = arith.constant 0 : index
    %c0_28 = arith.constant 0 : index
    %87 = vector.load %arg9[%c0_27, %c0_28] : memref<1x108xf32, #tpu.memory_space<vmem>>, vector<1x108xf32>
    %88 = vector.broadcast %77 : vector<128x1xf32> to vector<128x108xf32>
    %89 = vector.broadcast %87 : vector<1x108xf32> to vector<128x108xf32>
    %90 = arith.mulf %88, %89 : vector<128x108xf32>
    %91 = arith.addf %86, %90 : vector<128x108xf32>
    %cst_29 = arith.constant 0.000000e+00 : f32
    %92 = vector.broadcast %cst_29 : f32 to vector<128x108xf32>
    %93 = arith.cmpf ogt, %91, %92 : vector<128x108xf32>
    %cst_30 = arith.constant 0.000000e+00 : f32
    %94 = vector.broadcast %cst_30 : f32 to vector<128x108xf32>
    %95 = arith.select %93, %94, %13 : vector<128x108xi1>, vector<128x108xf32>
    %96 = arith.truncf %95 : vector<128x108xf32> to vector<128x108xbf16>
    %c0_31 = arith.constant 0 : index
    %c0_32 = arith.constant 0 : index
    %97 = vector.load %arg2[%c0_31, %c0_32] : memref<108x128xbf16, #tpu.memory_space<vmem>>, vector<108x128xbf16>
    %cst_33 = arith.constant dense<0.000000e+00> : vector<128x128xf32>
    %98 = tpu.matmul %96, %97, %cst_33 {dimension_numbers = #tpu.dot_dimension_numbers<[1], [0], [0], [1], [0, 0, 1, 1], [], []>} : vector<128x108xbf16>, vector<108x128xbf16>, vector<128x128xf32> -> vector<128x128xf32>
    %c0_34 = arith.constant 0 : index
    %c0_35 = arith.constant 0 : index
    %99 = vector.load %arg3[%c0_34, %c0_35] : memref<1x128xf32, #tpu.memory_space<vmem>>, vector<1x128xf32>
    %100 = vector.broadcast %99 : vector<1x128xf32> to vector<128x128xf32>
    %101 = arith.addf %98, %100 : vector<128x128xf32>
    %102 = arith.truncf %101 : vector<128x128xf32> to vector<128x128xbf16>
    %c0_36 = arith.constant 0 : index
    %c0_37 = arith.constant 0 : index
    %103 = vector.load %arg10[%c0_36, %c0_37] : memref<128x128xbf16, #tpu.memory_space<vmem>>, vector<128x128xbf16>
    tpu.vector_store %arg10[%c0_36, %c0_37], %102 {strides = array<i32>} : memref<128x128xbf16, #tpu.memory_space<vmem>>, vector<128x128xbf16>,
    return
  }
  func.func @transform_0(%arg0: i32) -> (i32, i32) {
    %c0_i32 = arith.constant 0 : i32
    %c0_i32_0 = arith.constant 0 : i32
    return %arg0, %c0_i32 : i32, i32
  }
  func.func @transform_1(%arg0: i32) -> (i32, i32) {
    %c0_i32 = arith.constant 0 : i32
    %c0_i32_0 = arith.constant 0 : i32
    %c0_i32_1 = arith.constant 0 : i32
    return %c0_i32, %c0_i32_0 : i32, i32
  }
  func.func @transform_2(%arg0: i32) -> (i32, i32) {
    %c0_i32 = arith.constant 0 : i32
    %c0_i32_0 = arith.constant 0 : i32
    %c0_i32_1 = arith.constant 0 : i32
    return %c0_i32, %c0_i32_0 : i32, i32
  }
  func.func @transform_3(%arg0: i32) -> (i32, i32) {
    %c0_i32 = arith.constant 0 : i32
    %c0_i32_0 = arith.constant 0 : i32
    %c0_i32_1 = arith.constant 0 : i32
    return %c0_i32, %c0_i32_0 : i32, i32
  }
  func.func @transform_4(%arg0: i32) -> (i32, i32) {
    %c0_i32 = arith.constant 0 : i32
    %c0_i32_0 = arith.constant 0 : i32
    %c0_i32_1 = arith.constant 0 : i32
    return %c0_i32, %c0_i32_0 : i32, i32
  }
  func.func @transform_5(%arg0: i32) -> (i32, i32) {
    %c0_i32 = arith.constant 0 : i32
    %c0_i32_0 = arith.constant 0 : i32
    %c0_i32_1 = arith.constant 0 : i32
    return %c0_i32, %c0_i32_0 : i32, i32
  }
  func.func @transform_6(%arg0: i32) -> (i32, i32) {
    %c0_i32 = arith.constant 0 : i32
    %c0_i32_0 = arith.constant 0 : i32
    %c0_i32_1 = arith.constant 0 : i32
    return %c0_i32, %c0_i32_0 : i32, i32
  }
  func.func @transform_7(%arg0: i32) -> (i32, i32) {
    %c0_i32 = arith.constant 0 : i32
    %c0_i32_0 = arith.constant 0 : i32
    %c0_i32_1 = arith.constant 0 : i32
    return %c0_i32, %c0_i32_0 : i32, i32
  }
  func.func @transform_8(%arg0: i32) -> (i32, i32) {
    %c0_i32 = arith.constant 0 : i32
    %c0_i32_0 = arith.constant 0 : i32
    %c0_i32_1 = arith.constant 0 : i32
    return %c0_i32, %c0_i32_0 : i32, i32
  }
  func.func @transform_9(%arg0: i32) -> (i32, i32) {
    %c0_i32 = arith.constant 0 : i32
    %c0_i32_0 = arith.constant 0 : i32
    return %arg0, %c0_i32 : i32, i32
  }
}

</mosaic_0001>

<llo_original>
// kernel: tpu_custom_call.1
$region0: #{tpu_custom_call.1}
  #allocation0 [shape = 'u32[]', space=smem, size = 0x4, offset = 0x4, fixed_abs, tag = 'smem constant byte address 0x4 - core index']
  #allocation1 [shape = 'u32[72,128]{1,0:T(1,128)}', space=vmem, size = 0x9000, scoped, tag = 'internal scratch']
  %s0 = inlined_call_operand.hbm [shape: f32[8,128], index: 0, kind: input, shape index: {}]
  %s1 = inlined_call_operand.hbm [shape: f32[8,128], index: 1, kind: output, shape index: {}]
  %s2 = sld [smem:[#allocation0]]
  $region18: #{tpu_custom_call.1} parent=0
    _
  %s4 = ssub.s32 1, %s2
  %s5 = scalar_select 0, %s4, %s2
  $region1: #{tpu_custom_call.1} parent=0
    #allocation2 [shape = 'u8[4096]{0}', space=vmem, size = 0x1000, scoped, tag = 'input window, operand 0, single buffered']
    #allocation3 [shape = 's32[1]{0}', space=sflag, size = 0x4, scoped, tag = 'scoped memory for tpu_custom_call.1']
    #allocation4 [shape = 's32[1]{0}', space=sflag, size = 0x4, scoped, tag = 'scoped memory for tpu_custom_call.1']
    #allocation5 [shape = 'u8[4096]{0}', space=vmem, size = 0x1000, scoped, tag = 'output window, operand 0, single buffered']
    %6 = vsyncpa [#allocation3], 0
    %7 = vsyncpa [#allocation4], 0
    // Predicated region
    $region2: #{tpu_custom_call.1} parent=1 // pred_check
      _
    $region3: #{tpu_custom_call.1} parent=1 // pred_check_branch
      %9 = sbr.rel (0) target = $region5
    $region4: #{tpu_custom_call.1} parent=1 // pred_region
      %11 = vsyncadd [#allocation3], 0
      %s13 = sshll.u32 %s0, 4
      %s14 = int_to_ptr.hbm [resolvable:$true] %s13
      %s15 = sshll.u32 [#allocation2], 4
      %s16 = int_to_ptr.vmem [resolvable:$true] %s15
      %18 = dma.hbm_to_vmem [thread:$0]  %s14, 128, %s16, [#allocation3]
    $region5: #{tpu_custom_call.1} parent=1 // pred_fallthru
      _
    // Predicated region
    $region6: #{tpu_custom_call.1} parent=1 // pred_check
      _
    $region7: #{tpu_custom_call.1} parent=1 // pred_check_branch
      %20 = sbr.rel (0) target = $region9
    $region8: #{tpu_custom_call.1} parent=1 // pred_region
      %22 = dma.done [#allocation3], 128
    $region9: #{tpu_custom_call.1} parent=1 // pred_fallthru
      _
    %v23 = vld [vmem:[#allocation2] sm:$0xff]
    %24 = vst [vmem:[#allocation5] sm:$0xff] %v23
    // Predicated region
    $region10: #{tpu_custom_call.1} parent=1 // pred_check
      _
    $region11: #{tpu_custom_call.1} parent=1 // pred_check_branch
      %26 = sbr.rel (0) target = $region13
    $region12: #{tpu_custom_call.1} parent=1 // pred_region
      %28 = vsyncadd [#allocation4], 0
      %s30 = sshll.u32 [#allocation5], 4
      %s31 = int_to_ptr.vmem [resolvable:$true] %s30
      %s32 = sshll.u32 %s1, 4
      %s33 = int_to_ptr.hbm [resolvable:$true] %s32
      %35 = dma.vmem_to_hbm [thread:$0]  %s31, 128, %s33, [#allocation4]
    $region13: #{tpu_custom_call.1} parent=1 // pred_fallthru
      _
    // Predicated region
    $region14: #{tpu_custom_call.1} parent=1 // pred_check
      _
    $region15: #{tpu_custom_call.1} parent=1 // pred_check_branch
      %37 = sbr.rel (0) target = $region17
    $region16: #{tpu_custom_call.1} parent=1 // pred_region
      %39 = dma.done [#allocation4], 128
    $region17: #{tpu_custom_call.1} parent=1 // pred_fallthru
      _
    %40 = vsyncpa [#allocation3], 1
    %41 = vsyncpa [#allocation4], 1

// kernel: tile.23
$region0: #{tile.23}
  #allocation0 [shape = 's32[1]{0}', space=sflag, size = 0x4, scoped, tag = 'scoped memory for tile.23']
  %s0 = inlined_call_operand.vmem [shape: f32[4], index: 0, kind: input, shape index: {}]
  %s1 = inlined_call_operand.vmem [shape: f32[27,4], index: 1, kind: output, shape index: {}]
  // Predicated region
  $region2: #{tile.23} parent=0 // pred_check
    _
  $region3: #{tile.23} parent=0 // pred_check_branch
    %3 = sbr.rel (0) target = $region5
  $region4: #{tile.23} parent=0 // pred_region
    _
  $region5: #{tile.23} parent=0 // pred_fallthru
    _
  %v4 = vld [vmem:[%s0] ss:$0 sm:$0xff]
  %5 = vst [vmem:[%s1] sm:$0xff] %v4
  %s6 = scalar_lea.vmem %s1, 8
  %7 = vst [vmem:[%s6] sm:$0xff] %v4
  %s8 = scalar_lea.vmem %s1, 16
  %9 = vst [vmem:[%s8] sm:$0xff] %v4
  %s10 = scalar_lea.vmem %s1, 24
  %11 = vst [vmem:[%s10] sm:$0xff] %v4

// kernel: _downsample_forward.2
$region0: #{_downsample_forward.2}
  #allocation0 [shape = 'u32[]', space=smem, size = 0x4, offset = 0x4, fixed_abs, tag = 'smem constant byte address 0x4 - core index']
  #allocation1 [shape = 'u32[72,128]{1,0:T(1,128)}', space=vmem, size = 0x9000, scoped, tag = 'internal scratch']
  %s0 = inlined_call_operand.vmem [shape: f32[32,128], index: 0, kind: input, shape index: {}]
  %s1 = inlined_call_operand.vmem [shape: f32[1,256], index: 1, kind: output, shape index: {0}]
  %s2 = inlined_call_operand.vmem [shape: f32[1,256], index: 2, kind: output, shape index: {1}]
  %3 = xla_tuple %s1, %s2
  %s4 = sld [smem:[#allocation0]]
  $region49: #{_downsample_forward.2} parent=0
    _
  %s6 = ssub.s32 1, %s4
  %s7 = scalar_select 0, %s6, %s4
  loop: start=0, step=1, limit=4
  $region2: #{_downsample_forward.2} parent=0 // loop_pre_header
    _
  $region3: #{_downsample_forward.2} parent=0 // loop_header
    %s9 = sphi 0, %s13
    %p10 = scmp.ge.s32.totalorder %s9, 4
    %s16 = sphi 0, %s28
    %s17 = sphi 0, %s24
    %s18 = sphi 0, %s16
    %s19 = sphi 0, %s17
    %s20 = sphi 0, %s18
    %s21 = sphi 0, %s19
    %s33 = sphi 0, %s35
    %s36 = sphi 0, %s33
    %s37 = sphi 0, %s36
    %s53 = sphi 0, %s37
    %s59 = sphi 0, %s61
    %s62 = sphi 0, %s59
    %s63 = sphi 0, %s62
    %s79 = sphi 0, %s63
    %s85 = sphi 0, %s87
    %s88 = sphi 0, %s85
    %s89 = sphi 0, %s88
    %s105 = sphi 0, %s89
  $region4: #{_downsample_forward.2} parent=0 // loop_header_branch
    %12 = sbr.rel (%p10) target = $region8
  $region5: #{_downsample_forward.2} parent=0 // loop_body
    %s14 = ssub.s32 %s9, 1
    %s15 = ssub.s32 %s9, 2
    %s22 = sadd.s32 1, %s17
    %p23 = scmp.ge.s32.totalorder %s22, 1
    %s24 = scalar_select %p23, 0, %s22
    %s25 = sadd.s32 1, %s16
    %s26 = scalar_select %p23, %s25, %s16
    %p27 = scmp.ge.s32.totalorder %s26, 2
    %s28 = scalar_select %p27, 0, %s26
    %s29 = sadd.s32 %s16, %s17
    %s30 = sadd.s32 %s28, %s24
    %s31 = ssub.s32 %s29, %s30
    %p32 = scmp.eq.s32.totalorder %s31, 0
    %s34 = sadd.s32 %s33, 1
    %s35 = scalar_select %p32, %s33, %s34
    %p38 = pneg %p32
    %p39 = scmp.eq.s32.totalorder %s9, 1
    %p40 = por %p38, %p39
    %p41 = scmp.ne.s32.totalorder %s33, %s36
    %p42 = scmp.eq.s32.totalorder %s9, 0
    %p43 = por %p41, %p42
    %p44 = scmp.ne.s32.totalorder %s33, %s36
    %p45 = scmp.eq.s32.totalorder %s14, 1
    %p46 = por %p44, %p45
    %p47 = scmp.ne.s32.totalorder %s36, %s37
    %p48 = scmp.eq.s32.totalorder %s14, 0
    %p49 = por %p47, %p48
    %p50 = scmp.ne.s32.totalorder %s36, %s37
    %p51 = scmp.eq.s32.totalorder %s15, 1
    %p52 = por %p50, %p51
    %p54 = scmp.ne.s32.totalorder %s37, %s53
    %p55 = scmp.eq.s32.totalorder %s15, 0
    %p56 = por %p54, %p55
    %s57 = ssub.s32 %s16, %s28
    %p58 = scmp.eq.s32.totalorder %s57, 0
    %s60 = sadd.s32 %s59, 1
    %s61 = scalar_select %p58, %s59, %s60
    %p64 = pneg %p58
    %p65 = scmp.eq.s32.totalorder %s9, 1
    %p66 = por %p64, %p65
    %p67 = scmp.ne.s32.totalorder %s59, %s62
    %p68 = scmp.eq.s32.totalorder %s9, 0
    %p69 = por %p67, %p68
    %p70 = scmp.ne.s32.totalorder %s59, %s62
    %p71 = scmp.eq.s32.totalorder %s14, 1
    %p72 = por %p70, %p71
    %p73 = scmp.ne.s32.totalorder %s62, %s63
    %p74 = scmp.eq.s32.totalorder %s14, 0
    %p75 = por %p73, %p74
    %p76 = scmp.ne.s32.totalorder %s62, %s63
    %p77 = scmp.eq.s32.totalorder %s15, 1
    %p78 = por %p76, %p77
    %p80 = scmp.ne.s32.totalorder %s63, %s79
    %p81 = scmp.eq.s32.totalorder %s15, 0
    %p82 = por %p80, %p81
    %s83 = ssub.s32 %s16, %s28
    %p84 = scmp.eq.s32.totalorder %s83, 0
    %s86 = sadd.s32 %s85, 1
    %s87 = scalar_select %p84, %s85, %s86
    %p90 = pneg %p84
    %p91 = scmp.eq.s32.totalorder %s9, 1
    %p92 = por %p90, %p91
    %p93 = scmp.ne.s32.totalorder %s85, %s88
    %p94 = scmp.eq.s32.totalorder %s9, 0
    %p95 = por %p93, %p94
    %p96 = scmp.ne.s32.totalorder %s85, %s88
    %p97 = scmp.eq.s32.totalorder %s14, 1
    %p98 = por %p96, %p97
    %p99 = scmp.ne.s32.totalorder %s88, %s89
    %p100 = scmp.eq.s32.totalorder %s14, 0
    %p101 = por %p99, %p100
    %p102 = scmp.ne.s32.totalorder %s88, %s89
    %p103 = scmp.eq.s32.totalorder %s15, 1
    %p104 = por %p102, %p103
    %p106 = scmp.ne.s32.totalorder %s89, %s105
    %p107 = scmp.eq.s32.totalorder %s15, 0
    %p108 = por %p106, %p107
    %p109 = scmp.le.s32.totalorder 1, %s9
    %p110 = scmp.lt.s32.totalorder %s9, 3
    %p111 = pnand %p109, %p110
    %p112 = pneg %p111
    // Predicated region
    $region9: #{_downsample_forward.2} parent=5 // pred_check
      _
    $region10: #{_downsample_forward.2} parent=5 // pred_check_branch
      %114 = sbr.rel (%p111) target = $region12
    $region11: #{_downsample_forward.2} parent=5 // pred_region
      %s115 = ssub.s32 %s9, 1
    $region12: #{_downsample_forward.2} parent=5 // pred_fallthru
      _
    %p116 = scmp.lt.s32.totalorder %s9, 2
    // Predicated region
    $region13: #{_downsample_forward.2} parent=5 // pred_check
      %p117 = pneg %p116
    $region14: #{_downsample_forward.2} parent=5 // pred_check_branch
      %119 = sbr.rel (%p117) target = $region16
    $region15: #{_downsample_forward.2} parent=5 // pred_region
      // Predicated region
      $region17: #{_downsample_forward.2} parent=15 // pred_check
        %p120 = pneg %p43
      $region18: #{_downsample_forward.2} parent=15 // pred_check_branch
        %122 = sbr.rel (%p120) target = $region20
      $region19: #{_downsample_forward.2} parent=15 // pred_region
        %s123 = sadd.s32 %s16, %s17
        %s124 = smul.u32 2, %s123
        %p125 = scmp.lt.s32.totalorder %s124, 3
        %s126 = scalar_select %p125, %s124, 3
        %s127 = smul.addr %s126, 8
        %s128 = scalar_lea.vmem %s0, %s127
        %s129 = sadd.s32 %s16, %s17
        %s130 = smul.u32 2, %s129
      $region20: #{_downsample_forward.2} parent=15 // pred_fallthru
        _
    $region16: #{_downsample_forward.2} parent=5 // pred_fallthru
      _
    %p131 = scmp.le.s32.totalorder 1, %s9
    %p132 = scmp.lt.s32.totalorder %s9, 3
    %p133 = pnand %p131, %p132
    %p134 = pneg %p133
    // Predicated region
    $region21: #{_downsample_forward.2} parent=5 // pred_check
      _
    $region22: #{_downsample_forward.2} parent=5 // pred_check_branch
      %136 = sbr.rel (%p133) target = $region24
    $region23: #{_downsample_forward.2} parent=5 // pred_region
      %s137 = ssub.s32 %s9, 1
      %s138 = sadd.s32 %s18, %s19
      %s139 = smul.u32 2, %s138
      %p140 = scmp.lt.s32.totalorder %s139, 3
      %s141 = scalar_select %p140, %s139, 3
      %s142 = smul.addr %s141, 8
      %s143 = scalar_lea.vmem %s0, %s142
      %p144 = pneg %p49
      %p145 = pneg %p46
      %p146 = pneg %p75
      %p147 = pneg %p72
      %p148 = scmp.lt.s32.totalorder %s18, 1
      %s149 = scalar_select %p148, %s18, 1
      %s150 = scalar_lea.vmem %s1, %s149
      %p151 = pneg %p101
      %p152 = pneg %p98
      %p153 = scmp.lt.s32.totalorder %s18, 1
      %s154 = scalar_select %p153, %s18, 1
      %s155 = scalar_lea.vmem %s2, %s154
      %s156 = sadd.s32 %s18, %s19
      %s157 = smul.u32 2, %s156
      %p158 = scmp.lt.s32.totalorder %s157, 3
      %s159 = scalar_select %p158, %s157, 3
      %s160 = smul.addr %s159, 8
      %s161 = scalar_lea.vmem %s0, %s160
      %s162 = sadd.s32 %s18, %s19
      %s163 = smul.u32 2, %s162
      %p164 = scmp.lt.s32.totalorder %s18, 1
      %s165 = scalar_select %p164, %s18, 1
      %s166 = scalar_lea.vmem %s1, %s165
      %p167 = scmp.lt.s32.totalorder %s18, 1
      %s168 = scalar_select %p167, %s18, 1
      %s169 = scalar_lea.vmem %s2, %s168
      %p170 = scmp.eq.s32.totalorder %s19, 0
      // Predicated region
      $region25: #{_downsample_forward.2} parent=23 // pred_check
        %p171 = pneg %p170
      $region26: #{_downsample_forward.2} parent=23 // pred_check_branch
        %173 = sbr.rel (%p171) target = $region28
      $region27: #{_downsample_forward.2} parent=23 // pred_region
        %174 = vst [vmem:[%s166] sm:$0x1] 0.0
        %175 = vst [vmem:[%s169] sm:$0x1] 0.0
      $region28: #{_downsample_forward.2} parent=23 // pred_fallthru
        _
      %v176 = vld [vmem:[%s161] sm:$0xff]
      %v177 = vld [vmem:[%s161 + $0x8] sm:$0xff]
      %v178 = vld [vmem:[%s166] sm:$0x1]
      %v179 = vadd.f32 %v176, %v177
      %v180 = vrot.slane %v179, 4
      %v181 = vadd.f32 %v179, %v180
      %v182 = vrot.slane %v181, 2
      %v183 = vadd.f32 %v181, %v182
      %v184 = vrot.slane %v183, 1
      %v185 = vadd.f32 %v183, %v184
      %v186 = vadd.f32 %v178, %v185
      %187 = vst [vmem:[%s166] sm:$0x1] %v186
      %v188 = vld [vmem:[%s169] sm:$0x1]
      %v189 = vmul.f32 %v176, %v176
      %v190 = vmul.f32 %v177, %v177
      %v191 = vadd.f32 %v189, %v190
      %v192 = vrot.slane %v191, 4
      %v193 = vadd.f32 %v191, %v192
      %v194 = vrot.slane %v193, 2
      %v195 = vadd.f32 %v193, %v194
      %v196 = vrot.slane %v195, 1
      %v197 = vadd.f32 %v195, %v196
      %v198 = vadd.f32 %v188, %v197
      %199 = vst [vmem:[%s169] sm:$0x1] %v198
      %p200 = scmp.lt.s32.totalorder %s18, 1
      %s201 = scalar_select %p200, %s18, 1
      %s202 = scalar_lea.vmem %s1, %s201
      %p203 = scmp.lt.s32.totalorder %s18, 1
      %s204 = scalar_select %p203, %s18, 1
      %s205 = scalar_lea.vmem %s2, %s204
      // Predicated region
      $region29: #{_downsample_forward.2} parent=23 // pred_check
        %p206 = pneg %p72
      $region30: #{_downsample_forward.2} parent=23 // pred_check_branch
        %208 = sbr.rel (%p206) target = $region32
      $region31: #{_downsample_forward.2} parent=23 // pred_region
        _
      $region32: #{_downsample_forward.2} parent=23 // pred_fallthru
        _
      // Predicated region
      $region33: #{_downsample_forward.2} parent=23 // pred_check
        %p209 = pneg %p98
      $region34: #{_downsample_forward.2} parent=23 // pred_check_branch
        %211 = sbr.rel (%p209) target = $region36
      $region35: #{_downsample_forward.2} parent=23 // pred_region
        _
      $region36: #{_downsample_forward.2} parent=23 // pred_fallthru
        _
    $region24: #{_downsample_forward.2} parent=5 // pred_fallthru
      _
    %p212 = scmp.le.s32.totalorder 2, %s9
    // Predicated region
    $region37: #{_downsample_forward.2} parent=5 // pred_check
      %p213 = pneg %p212
    $region38: #{_downsample_forward.2} parent=5 // pred_check_branch
      %215 = sbr.rel (%p213) target = $region40
    $region39: #{_downsample_forward.2} parent=5 // pred_region
      %s216 = ssub.s32 %s9, 2
      // Predicated region
      $region41: #{_downsample_forward.2} parent=39 // pred_check
        %p217 = pneg %p78
      $region42: #{_downsample_forward.2} parent=39 // pred_check_branch
        %219 = sbr.rel (%p217) target = $region44
      $region43: #{_downsample_forward.2} parent=39 // pred_region
        %p220 = scmp.lt.s32.totalorder %s20, 1
        %s221 = scalar_select %p220, %s20, 1
        %s222 = scalar_lea.vmem %s1, %s221
      $region44: #{_downsample_forward.2} parent=39 // pred_fallthru
        _
      // Predicated region
      $region45: #{_downsample_forward.2} parent=39 // pred_check
        %p223 = pneg %p104
      $region46: #{_downsample_forward.2} parent=39 // pred_check_branch
        %225 = sbr.rel (%p223) target = $region48
      $region47: #{_downsample_forward.2} parent=39 // pred_region
        %p226 = scmp.lt.s32.totalorder %s20, 1
        %s227 = scalar_select %p226, %s20, 1
        %s228 = scalar_lea.vmem %s2, %s227
      $region48: #{_downsample_forward.2} parent=39 // pred_fallthru
        _
    $region40: #{_downsample_forward.2} parent=5 // pred_fallthru
      _
  $region6: #{_downsample_forward.2} parent=0 // loop_footer
    %s13 = sadd.s32 1, %s9
  $region7: #{_downsample_forward.2} parent=0 // loop_footer_branch
    %8 = sbr.rel target = $region3
  $region8: #{_downsample_forward.2} parent=0 // loop_exit
    _

// kernel: _downsample_forward.3
$region0: #{_downsample_forward.3}
  #allocation0 [shape = 'u32[]', space=smem, size = 0x4, offset = 0x4, fixed_abs, tag = 'smem constant byte address 0x4 - core index']
  #allocation1 [shape = 'u32[72,128]{1,0:T(1,128)}', space=vmem, size = 0x9000, scoped, tag = 'internal scratch']
  %s0 = inlined_call_operand.vmem [shape: bf16[128,108], index: 0, kind: input, shape index: {}]
  %s1 = inlined_call_operand.vmem [shape: bf16[108,128], index: 1, kind: input, shape index: {}]
  %s2 = inlined_call_operand.vmem [shape: f32[1,128], index: 2, kind: input, shape index: {}]
  %s3 = inlined_call_operand.vmem [shape: f32[1,108], index: 3, kind: input, shape index: {}]
  %s4 = inlined_call_operand.vmem [shape: f32[1,108], index: 4, kind: input, shape index: {}]
  %s5 = inlined_call_operand.vmem [shape: f32[1,108], index: 5, kind: input, shape index: {}]
  %s6 = inlined_call_operand.vmem [shape: f32[1,108], index: 6, kind: input, shape index: {}]
  %s7 = inlined_call_operand.vmem [shape: f32[1,108], index: 7, kind: input, shape index: {}]
  %s8 = inlined_call_operand.vmem [shape: f32[1,108], index: 8, kind: input, shape index: {}]
  %s9 = inlined_call_operand.hbm [shape: bf16[128,128], index: 9, kind: output, shape index: {}]
  %s10 = sld [smem:[#allocation0]]
  $region46: #{_downsample_forward.3} parent=0
    _
  %s12 = ssub.s32 1, %s10
  %s13 = scalar_select 0, %s12, %s10
  $region1: #{_downsample_forward.3} parent=0
    #allocation2 [shape = 'u8[32768]{0}', space=vmem, size = 0x8000, scoped, tag = 'output window, operand 0, single buffered']
    #allocation3 [shape = 's32[1]{0}', space=sflag, size = 0x4, scoped, tag = 'scoped memory for _downsample_forward.3']
    %14 = vsyncpa [#allocation3], 0
    // Predicated region
    $region2: #{_downsample_forward.3} parent=1 // pred_check
      _
    $region3: #{_downsample_forward.3} parent=1 // pred_check_branch
      %16 = sbr.rel (0) target = $region5
    $region4: #{_downsample_forward.3} parent=1 // pred_region
      _
    $region5: #{_downsample_forward.3} parent=1 // pred_fallthru
      _
    // Predicated region
    $region6: #{_downsample_forward.3} parent=1 // pred_check
      _
    $region7: #{_downsample_forward.3} parent=1 // pred_check_branch
      %18 = sbr.rel (0) target = $region9
    $region8: #{_downsample_forward.3} parent=1 // pred_region
      _
    $region9: #{_downsample_forward.3} parent=1 // pred_fallthru
      _
    // Predicated region
    $region10: #{_downsample_forward.3} parent=1 // pred_check
      _
    $region11: #{_downsample_forward.3} parent=1 // pred_check_branch
      %20 = sbr.rel (0) target = $region13
    $region12: #{_downsample_forward.3} parent=1 // pred_region
      _
    $region13: #{_downsample_forward.3} parent=1 // pred_fallthru
      _
    // Predicated region
    $region14: #{_downsample_forward.3} parent=1 // pred_check
      _
    $region15: #{_downsample_forward.3} parent=1 // pred_check_branch
      %22 = sbr.rel (0) target = $region17
    $region16: #{_downsample_forward.3} parent=1 // pred_region
      _
    $region17: #{_downsample_forward.3} parent=1 // pred_fallthru
      _
    // Predicated region
    $region18: #{_downsample_forward.3} parent=1 // pred_check
      _
    $region19: #{_downsample_forward.3} parent=1 // pred_check_branch
      %24 = sbr.rel (0) target = $region21
    $region20: #{_downsample_forward.3} parent=1 // pred_region
      _
    $region21: #{_downsample_forward.3} parent=1 // pred_fallthru
      _
    // Predicated region
    $region22: #{_downsample_forward.3} parent=1 // pred_check
      _
    $region23: #{_downsample_forward.3} parent=1 // pred_check_branch
      %26 = sbr.rel (0) target = $region25
    $region24: #{_downsample_forward.3} parent=1 // pred_region
      _
    $region25: #{_downsample_forward.3} parent=1 // pred_fallthru
      _
    // Predicated region
    $region26: #{_downsample_forward.3} parent=1 // pred_check
      _
    $region27: #{_downsample_forward.3} parent=1 // pred_check_branch
      %28 = sbr.rel (0) target = $region29
    $region28: #{_downsample_forward.3} parent=1 // pred_region
      _
    $region29: #{_downsample_forward.3} parent=1 // pred_fallthru
      _
    // Predicated region
    $region30: #{_downsample_forward.3} parent=1 // pred_check
      _
    $region31: #{_downsample_forward.3} parent=1 // pred_check_branch
      %30 = sbr.rel (0) target = $region33
    $region32: #{_downsample_forward.3} parent=1 // pred_region
      _
    $region33: #{_downsample_forward.3} parent=1 // pred_fallthru
      _
    // Predicated region
    $region34: #{_downsample_forward.3} parent=1 // pred_check
      _
    $region35: #{_downsample_forward.3} parent=1 // pred_check_branch
      %32 = sbr.rel (0) target = $region37
    $region36: #{_downsample_forward.3} parent=1 // pred_region
      _
    $region37: #{_downsample_forward.3} parent=1 // pred_fallthru
      _
    %v34 = vld [vmem:[%s0] sm:$0xf]
    %v35 = vld [vmem:[%s0 + $0x4] sm:$0xf]
    %v36 = vld [vmem:[%s0 + $0x8] sm:$0xf]
    %v37 = vld [vmem:[%s0 + $0xc] sm:$0xf]
    %v38 = vld [vmem:[%s0 + $0x10] sm:$0xf]
    %v39 = vld [vmem:[%s0 + $0x14] sm:$0xf]
    %v40 = vld [vmem:[%s0 + $0x18] sm:$0xf]
    %v41 = vld [vmem:[%s0 + $0x1c] sm:$0xf]
    %v42 = vld [vmem:[%s0 + $0x20] sm:$0xf]
    %v43 = vld [vmem:[%s0 + $0x24] sm:$0xf]
    %v44 = vld [vmem:[%s0 + $0x28] sm:$0xf]
    %v45 = vld [vmem:[%s0 + $0x2c] sm:$0xf]
    %v46 = vld [vmem:[%s0 + $0x30] sm:$0xf]
    %v47 = vld [vmem:[%s0 + $0x34] sm:$0xf]
    %v48 = vld [vmem:[%s0 + $0x38] sm:$0xf]
    %v49 = vld [vmem:[%s0 + $0x3c] sm:$0xf]
    %v50 = vunpack.c.l.bf16 %v34
    %v51 = vunpack.c.l.bf16 %v35
    %v52 = vunpack.c.l.bf16 %v36
    %v53 = vunpack.c.l.bf16 %v37
    %v54 = vunpack.c.l.bf16 %v38
    %v55 = vunpack.c.l.bf16 %v39
    %v56 = vunpack.c.l.bf16 %v40
    %v57 = vunpack.c.l.bf16 %v41
    %v58 = vunpack.c.l.bf16 %v42
    %v59 = vunpack.c.l.bf16 %v43
    %v60 = vunpack.c.l.bf16 %v44
    %v61 = vunpack.c.l.bf16 %v45
    %v62 = vunpack.c.l.bf16 %v46
    %v63 = vunpack.c.l.bf16 %v47
    %v64 = vunpack.c.l.bf16 %v48
    %v65 = vunpack.c.l.bf16 %v49
    %v66 = vld [vmem:[%s3] sm:$0x1]
    %v68 = vperm.slane %v66, 0
    %v70 = vmul.f32 %v50, %v68
    %v71 = vmul.f32 %v51, %v68
    %v72 = vmul.f32 %v52, %v68
    %v73 = vmul.f32 %v53, %v68
    %v74 = vmul.f32 %v54, %v68
    %v75 = vmul.f32 %v55, %v68
    %v76 = vmul.f32 %v56, %v68
    %v77 = vmul.f32 %v57, %v68
    %v78 = vmul.f32 %v58, %v68
    %v79 = vmul.f32 %v59, %v68
    %v80 = vmul.f32 %v60, %v68
    %v81 = vmul.f32 %v61, %v68
    %v82 = vmul.f32 %v62, %v68
    %v83 = vmul.f32 %v63, %v68
    %v84 = vmul.f32 %v64, %v68
    %v85 = vmul.f32 %v65, %v68
    %v86 = vld [vmem:[%s4] sm:$0x1]
    %v88 = vperm.slane %v86, 0
    %v90 = vadd.f32 %v70, %v88
    %v91 = vadd.f32 %v71, %v88
    %v92 = vadd.f32 %v72, %v88
    %v93 = vadd.f32 %v73, %v88
    %v94 = vadd.f32 %v74, %v88
    %v95 = vadd.f32 %v75, %v88
    %v96 = vadd.f32 %v76, %v88
    %v97 = vadd.f32 %v77, %v88
    %v98 = vadd.f32 %v78, %v88
    %v99 = vadd.f32 %v79, %v88
    %v100 = vadd.f32 %v80, %v88
    %v101 = vadd.f32 %v81, %v88
    %v102 = vadd.f32 %v82, %v88
    %v103 = vadd.f32 %v83, %v88
    %v104 = vadd.f32 %v84, %v88
    %v105 = vadd.f32 %v85, %v88
    %vm106 = vcmp.ge.f32.partialorder %v90, 0.0
    %vm107 = vcmp.ge.f32.partialorder %v91, 0.0
    %vm108 = vcmp.ge.f32.partialorder %v92, 0.0
    %vm109 = vcmp.ge.f32.partialorder %v93, 0.0
    %vm110 = vcmp.ge.f32.partialorder %v94, 0.0
    %vm111 = vcmp.ge.f32.partialorder %v95, 0.0
    %vm112 = vcmp.ge.f32.partialorder %v96, 0.0
    %vm113 = vcmp.ge.f32.partialorder %v97, 0.0
    %vm114 = vcmp.ge.f32.partialorder %v98, 0.0
    %vm115 = vcmp.ge.f32.partialorder %v99, 0.0
    %vm116 = vcmp.ge.f32.partialorder %v100, 0.0
    %vm117 = vcmp.ge.f32.partialorder %v101, 0.0
    %vm118 = vcmp.ge.f32.partialorder %v102, 0.0
    %vm119 = vcmp.ge.f32.partialorder %v103, 0.0
    %vm120 = vcmp.ge.f32.partialorder %v104, 0.0
    %vm121 = vcmp.ge.f32.partialorder %v105, 0.0
    %v122 = vld [vmem:[%s5] sm:$0x1]
    %v124 = vperm.slane %v122, 0
    %v126 = vmul.f32 %v124, %v90
    %v127 = vmul.f32 %v124, %v91
    %v128 = vmul.f32 %v124, %v92
    %v129 = vmul.f32 %v124, %v93
    %v130 = vmul.f32 %v124, %v94
    %v131 = vmul.f32 %v124, %v95
    %v132 = vmul.f32 %v124, %v96
    %v133 = vmul.f32 %v124, %v97
    %v134 = vmul.f32 %v124, %v98
    %v135 = vmul.f32 %v124, %v99
    %v136 = vmul.f32 %v124, %v100
    %v137 = vmul.f32 %v124, %v101
    %v138 = vmul.f32 %v124, %v102
    %v139 = vmul.f32 %v124, %v103
    %v140 = vmul.f32 %v124, %v104
    %v141 = vmul.f32 %v124, %v105
    %v142 = vsel %vm106, %v90, %v126
    %v143 = vsel %vm107, %v91, %v127
    %v144 = vsel %vm108, %v92, %v128
    %v145 = vsel %vm109, %v93, %v129
    %v146 = vsel %vm110, %v94, %v130
    %v147 = vsel %vm111, %v95, %v131
    %v148 = vsel %vm112, %v96, %v132
    %v149 = vsel %vm113, %v97, %v133
    %v150 = vsel %vm114, %v98, %v134
    %v151 = vsel %vm115, %v99, %v135
    %v152 = vsel %vm116, %v100, %v136
    %v153 = vsel %vm117, %v101, %v137
    %v154 = vsel %vm118, %v102, %v138
    %v155 = vsel %vm119, %v103, %v139
    %v156 = vsel %vm120, %v104, %v140
    %v157 = vsel %vm121, %v105, %v141
    %s158 = smul.u32 0, 128
    %v159 = vlaneseq
    %v160 = vshrl.u32 %v159, 7
    %v161 = vadd.s32 %v160, 8
    %v162 = vadd.s32 %v160, 16
    %v163 = vadd.s32 %v160, 24
    %v164 = vadd.s32 %v160, 32
    %v165 = vadd.s32 %v160, 40
    %v166 = vadd.s32 %v160, 48
    %v167 = vadd.s32 %v160, 56
    %v168 = vadd.s32 %v160, 64
    %v169 = vadd.s32 %v160, 72
    %v170 = vadd.s32 %v160, 80
    %v171 = vadd.s32 %v160, 88
    %v172 = vadd.s32 %v160, 96
    %v173 = vadd.s32 %v160, 104
    %v174 = vadd.s32 %v160, 112
    %v175 = vadd.s32 %v160, 120
    %v176 = vstv %s158
    %v177 = vadd.s32 %v176, %v160
    %v178 = vadd.s32 %v176, %v161
    %v179 = vadd.s32 %v176, %v162
    %v180 = vadd.s32 %v176, %v163
    %v181 = vadd.s32 %v176, %v164
    %v182 = vadd.s32 %v176, %v165
    %v183 = vadd.s32 %v176, %v166
    %v184 = vadd.s32 %v176, %v167
    %v185 = vadd.s32 %v176, %v168
    %v186 = vadd.s32 %v176, %v169
    %v187 = vadd.s32 %v176, %v170
    %v188 = vadd.s32 %v176, %v171
    %v189 = vadd.s32 %v176, %v172
    %v190 = vadd.s32 %v176, %v173
    %v191 = vadd.s32 %v176, %v174
    %v192 = vadd.s32 %v176, %v175
    %vm193 = vcmp.lt.s32.totalorder %v177, 0
    %v194 = vsub.s32 0, %v177
    %v195 = vsel %vm193, %v194, %v177
    %v196 = vshrl.u32 %v195, 6
    %v197 = vand.u32 %v195, 63
    %v198 = vsub.s32 0, %v197
    %v199 = vsel %vm193, %v198, %v197
    %vm200 = vcmp.lt.s32.totalorder %v178, 0
    %v201 = vsub.s32 0, %v178
    %v202 = vsel %vm200, %v201, %v178
    %v203 = vshrl.u32 %v202, 6
    %v204 = vand.u32 %v202, 63
    %v205 = vsub.s32 0, %v204
    %v206 = vsel %vm200, %v205, %v204
    %vm207 = vcmp.lt.s32.totalorder %v179, 0
    %v208 = vsub.s32 0, %v179
    %v209 = vsel %vm207, %v208, %v179
    %v210 = vshrl.u32 %v209, 6
    %v211 = vand.u32 %v209, 63
    %v212 = vsub.s32 0, %v211
    %v213 = vsel %vm207, %v212, %v211
    %vm214 = vcmp.lt.s32.totalorder %v180, 0
    %v215 = vsub.s32 0, %v180
    %v216 = vsel %vm214, %v215, %v180
    %v217 = vshrl.u32 %v216, 6
    %v218 = vand.u32 %v216, 63
    %v219 = vsub.s32 0, %v218
    %v220 = vsel %vm214, %v219, %v218
    %vm221 = vcmp.lt.s32.totalorder %v181, 0
    %v222 = vsub.s32 0, %v181
    %v223 = vsel %vm221, %v222, %v181
    %v224 = vshrl.u32 %v223, 6
    %v225 = vand.u32 %v223, 63
    %v226 = vsub.s32 0, %v225
    %v227 = vsel %vm221, %v226, %v225
    %vm228 = vcmp.lt.s32.totalorder %v182, 0
    %v229 = vsub.s32 0, %v182
    %v230 = vsel %vm228, %v229, %v182
    %v231 = vshrl.u32 %v230, 6
    %v232 = vand.u32 %v230, 63
    %v233 = vsub.s32 0, %v232
    %v234 = vsel %vm228, %v233, %v232
    %vm235 = vcmp.lt.s32.totalorder %v183, 0
    %v236 = vsub.s32 0, %v183
    %v237 = vsel %vm235, %v236, %v183
    %v238 = vshrl.u32 %v237, 6
    %v239 = vand.u32 %v237, 63
    %v240 = vsub.s32 0, %v239
    %v241 = vsel %vm235, %v240, %v239
    %vm242 = vcmp.lt.s32.totalorder %v184, 0
    %v243 = vsub.s32 0, %v184
    %v244 = vsel %vm242, %v243, %v184
    %v245 = vshrl.u32 %v244, 6
    %v246 = vand.u32 %v244, 63
    %v247 = vsub.s32 0, %v246
    %v248 = vsel %vm242, %v247, %v246
    %vm249 = vcmp.lt.s32.totalorder %v185, 0
    %v250 = vsub.s32 0, %v185
    %v251 = vsel %vm249, %v250, %v185
    %v252 = vshrl.u32 %v251, 6
    %v253 = vand.u32 %v251, 63
    %v254 = vsub.s32 0, %v253
    %v255 = vsel %vm249, %v254, %v253
    %vm256 = vcmp.lt.s32.totalorder %v186, 0
    %v257 = vsub.s32 0, %v186
    %v258 = vsel %vm256, %v257, %v186
    %v259 = vshrl.u32 %v258, 6
    %v260 = vand.u32 %v258, 63
    %v261 = vsub.s32 0, %v260
    %v262 = vsel %vm256, %v261, %v260
    %vm263 = vcmp.lt.s32.totalorder %v187, 0
    %v264 = vsub.s32 0, %v187
    %v265 = vsel %vm263, %v264, %v187
    %v266 = vshrl.u32 %v265, 6
    %v267 = vand.u32 %v265, 63
    %v268 = vsub.s32 0, %v267
    %v269 = vsel %vm263, %v268, %v267
    %vm270 = vcmp.lt.s32.totalorder %v188, 0
    %v271 = vsub.s32 0, %v188
    %v272 = vsel %vm270, %v271, %v188
    %v273 = vshrl.u32 %v272, 6
    %v274 = vand.u32 %v272, 63
    %v275 = vsub.s32 0, %v274
    %v276 = vsel %vm270, %v275, %v274
    %vm277 = vcmp.lt.s32.totalorder %v189, 0
    %v278 = vsub.s32 0, %v189
    %v279 = vsel %vm277, %v278, %v189
    %v280 = vshrl.u32 %v279, 6
    %v281 = vand.u32 %v279, 63
    %v282 = vsub.s32 0, %v281
    %v283 = vsel %vm277, %v282, %v281
    %vm284 = vcmp.lt.s32.totalorder %v190, 0
    %v285 = vsub.s32 0, %v190
    %v286 = vsel %vm284, %v285, %v190
    %v287 = vshrl.u32 %v286, 6
    %v288 = vand.u32 %v286, 63
    %v289 = vsub.s32 0, %v288
    %v290 = vsel %vm284, %v289, %v288
    %vm291 = vcmp.lt.s32.totalorder %v191, 0
    %v292 = vsub.s32 0, %v191
    %v293 = vsel %vm291, %v292, %v191
    %v294 = vshrl.u32 %v293, 6
    %v295 = vand.u32 %v293, 63
    %v296 = vsub.s32 0, %v295
    %v297 = vsel %vm291, %v296, %v295
    %vm298 = vcmp.lt.s32.totalorder %v192, 0
    %v299 = vsub.s32 0, %v192
    %v300 = vsel %vm298, %v299, %v192
    %v301 = vshrl.u32 %v300, 6
    %v302 = vand.u32 %v300, 63
    %v303 = vsub.s32 0, %v302
    %v304 = vsel %vm298, %v303, %v302
    %vm305 = vcmp.ne.s32.totalorder %v199, 0
    %vm306 = vcmp.ne.s32.totalorder %v206, 0
    %vm307 = vcmp.ne.s32.totalorder %v213, 0
    %vm308 = vcmp.ne.s32.totalorder %v220, 0
    %vm309 = vcmp.ne.s32.totalorder %v227, 0
    %vm310 = vcmp.ne.s32.totalorder %v234, 0
    %vm311 = vcmp.ne.s32.totalorder %v241, 0
    %vm312 = vcmp.ne.s32.totalorder %v248, 0
    %vm313 = vcmp.ne.s32.totalorder %v255, 0
    %vm314 = vcmp.ne.s32.totalorder %v262, 0
    %vm315 = vcmp.ne.s32.totalorder %v269, 0
    %vm316 = vcmp.ne.s32.totalorder %v276, 0
    %vm317 = vcmp.ne.s32.totalorder %v283, 0
    %vm318 = vcmp.ne.s32.totalorder %v290, 0
    %vm319 = vcmp.ne.s32.totalorder %v297, 0
    %vm320 = vcmp.ne.s32.totalorder %v304, 0
    %vm321 = vcmp.lt.s32.totalorder %v199, 0
    %vm322 = vcmp.lt.s32.totalorder %v206, 0
    %vm323 = vcmp.lt.s32.totalorder %v213, 0
    %vm324 = vcmp.lt.s32.totalorder %v220, 0
    %vm325 = vcmp.lt.s32.totalorder %v227, 0
    %vm326 = vcmp.lt.s32.totalorder %v234, 0
    %vm327 = vcmp.lt.s32.totalorder %v241, 0
    %vm328 = vcmp.lt.s32.totalorder %v248, 0
    %vm329 = vcmp.lt.s32.totalorder %v255, 0
    %vm330 = vcmp.lt.s32.totalorder %v262, 0
    %vm331 = vcmp.lt.s32.totalorder %v269, 0
    %vm332 = vcmp.lt.s32.totalorder %v276, 0
    %vm333 = vcmp.lt.s32.totalorder %v283, 0
    %vm334 = vcmp.lt.s32.totalorder %v290, 0
    %vm335 = vcmp.lt.s32.totalorder %v297, 0
    %vm336 = vcmp.lt.s32.totalorder %v304, 0
    %vm337 = vmand %vm321, %vm305
    %vm338 = vmand %vm322, %vm306
    %vm339 = vmand %vm323, %vm307
    %vm340 = vmand %vm324, %vm308
    %vm341 = vmand %vm325, %vm309
    %vm342 = vmand %vm326, %vm310
    %vm343 = vmand %vm327, %vm311
    %vm344 = vmand %vm328, %vm312
    %vm345 = vmand %vm329, %vm313
    %vm346 = vmand %vm330, %vm314
    %vm347 = vmand %vm331, %vm315
    %vm348 = vmand %vm332, %vm316
    %vm349 = vmand %vm333, %vm317
    %vm350 = vmand %vm334, %vm318
    %vm351 = vmand %vm335, %vm319
    %vm352 = vmand %vm336, %vm320
    %v353 = vadd.s32 %v199, 64
    %v354 = vadd.s32 %v206, 64
    %v355 = vadd.s32 %v213, 64
    %v356 = vadd.s32 %v220, 64
    %v357 = vadd.s32 %v227, 64
    %v358 = vadd.s32 %v234, 64
    %v359 = vadd.s32 %v241, 64
    %v360 = vadd.s32 %v248, 64
    %v361 = vadd.s32 %v255, 64
    %v362 = vadd.s32 %v262, 64
    %v363 = vadd.s32 %v269, 64
    %v364 = vadd.s32 %v276, 64
    %v365 = vadd.s32 %v283, 64
    %v366 = vadd.s32 %v290, 64
    %v367 = vadd.s32 %v297, 64
    %v368 = vadd.s32 %v304, 64
    %v369 = vsel %vm337, %v353, %v199
    %v370 = vsel %vm338, %v354, %v206
    %v371 = vsel %vm339, %v355, %v213
    %v372 = vsel %vm340, %v356, %v220
    %v373 = vsel %vm341, %v357, %v227
    %v374 = vsel %vm342, %v358, %v234
    %v375 = vsel %vm343, %v359, %v241
    %v376 = vsel %vm344, %v360, %v248
    %v377 = vsel %vm345, %v361, %v255
    %v378 = vsel %vm346, %v362, %v262
    %v379 = vsel %vm347, %v363, %v269
    %v380 = vsel %vm348, %v364, %v276
    %v381 = vsel %vm349, %v365, %v283
    %v382 = vsel %vm350, %v366, %v290
    %v383 = vsel %vm351, %v367, %v297
    %v384 = vsel %vm352, %v368, %v304
    %vm385 = vcmp.lt.s32.totalorder %v369, 16
    %vm386 = vcmp.lt.s32.totalorder %v370, 16
    %vm387 = vcmp.lt.s32.totalorder %v371, 16
    %vm388 = vcmp.lt.s32.totalorder %v372, 16
    %vm389 = vcmp.lt.s32.totalorder %v373, 16
    %vm390 = vcmp.lt.s32.totalorder %v374, 16
    %vm391 = vcmp.lt.s32.totalorder %v375, 16
    %vm392 = vcmp.lt.s32.totalorder %v376, 16
    %vm393 = vcmp.lt.s32.totalorder %v377, 16
    %vm394 = vcmp.lt.s32.totalorder %v378, 16
    %vm395 = vcmp.lt.s32.totalorder %v379, 16
    %vm396 = vcmp.lt.s32.totalorder %v380, 16
    %vm397 = vcmp.lt.s32.totalorder %v381, 16
    %vm398 = vcmp.lt.s32.totalorder %v382, 16
    %vm399 = vcmp.lt.s32.totalorder %v383, 16
    %vm400 = vcmp.lt.s32.totalorder %v384, 16
    %v401 = vsel %vm385, 1, 0
    %v402 = vsel %vm386, 1, 0
    %v403 = vsel %vm387, 1, 0
    %v404 = vsel %vm388, 1, 0
    %v405 = vsel %vm389, 1, 0
    %v406 = vsel %vm390, 1, 0
    %v407 = vsel %vm391, 1, 0
    %v408 = vsel %vm392, 1, 0
    %v409 = vsel %vm393, 1, 0
    %v410 = vsel %vm394, 1, 0
    %v411 = vsel %vm395, 1, 0
    %v412 = vsel %vm396, 1, 0
    %v413 = vsel %vm397, 1, 0
    %v414 = vsel %vm398, 1, 0
    %v415 = vsel %vm399, 1, 0
    %v416 = vsel %vm400, 1, 0
    %v417 = vcvt.s32.f32 %v401
    %v418 = vcvt.s32.f32 %v402
    %v419 = vcvt.s32.f32 %v403
    %v420 = vcvt.s32.f32 %v404
    %v421 = vcvt.s32.f32 %v405
    %v422 = vcvt.s32.f32 %v406
    %v423 = vcvt.s32.f32 %v407
    %v424 = vcvt.s32.f32 %v408
    %v425 = vcvt.s32.f32 %v409
    %v426 = vcvt.s32.f32 %v410
    %v427 = vcvt.s32.f32 %v411
    %v428 = vcvt.s32.f32 %v412
    %v429 = vcvt.s32.f32 %v413
    %v430 = vcvt.s32.f32 %v414
    %v431 = vcvt.s32.f32 %v415
    %v432 = vcvt.s32.f32 %v416
    %vm433 = vcmp.lt.s32.totalorder %v369, 0
    %v434 = vsub.s32 0, %v369
    %v435 = vsel %vm433, %v434, %v369
    %v436 = vshrl.u32 %v435, 4
    %v437 = vand.u32 %v435, 15
    %v438 = vsub.s32 0, %v437
    %v439 = vsel %vm433, %v438, %v437
    %vm440 = vcmp.lt.s32.totalorder %v370, 0
    %v441 = vsub.s32 0, %v370
    %v442 = vsel %vm440, %v441, %v370
    %v443 = vshrl.u32 %v442, 4
    %v444 = vand.u32 %v442, 15
    %v445 = vsub.s32 0, %v444
    %v446 = vsel %vm440, %v445, %v444
    %vm447 = vcmp.lt.s32.totalorder %v371, 0
    %v448 = vsub.s32 0, %v371
    %v449 = vsel %vm447, %v448, %v371
    %v450 = vshrl.u32 %v449, 4
    %v451 = vand.u32 %v449, 15
    %v452 = vsub.s32 0, %v451
    %v453 = vsel %vm447, %v452, %v451
    %vm454 = vcmp.lt.s32.totalorder %v372, 0
    %v455 = vsub.s32 0, %v372
    %v456 = vsel %vm454, %v455, %v372
    %v457 = vshrl.u32 %v456, 4
    %v458 = vand.u32 %v456, 15
    %v459 = vsub.s32 0, %v458
    %v460 = vsel %vm454, %v459, %v458
    %vm461 = vcmp.lt.s32.totalorder %v373, 0
    %v462 = vsub.s32 0, %v373
    %v463 = vsel %vm461, %v462, %v373
    %v464 = vshrl.u32 %v463, 4
    %v465 = vand.u32 %v463, 15
    %v466 = vsub.s32 0, %v465
    %v467 = vsel %vm461, %v466, %v465
    %vm468 = vcmp.lt.s32.totalorder %v374, 0
    %v469 = vsub.s32 0, %v374
    %v470 = vsel %vm468, %v469, %v374
    %v471 = vshrl.u32 %v470, 4
    %v472 = vand.u32 %v470, 15
    %v473 = vsub.s32 0, %v472
    %v474 = vsel %vm468, %v473, %v472
    %vm475 = vcmp.lt.s32.totalorder %v375, 0
    %v476 = vsub.s32 0, %v375
    %v477 = vsel %vm475, %v476, %v375
    %v478 = vshrl.u32 %v477, 4
    %v479 = vand.u32 %v477, 15
    %v480 = vsub.s32 0, %v479
    %v481 = vsel %vm475, %v480, %v479
    %vm482 = vcmp.lt.s32.totalorder %v376, 0
    %v483 = vsub.s32 0, %v376
    %v484 = vsel %vm482, %v483, %v376
    %v485 = vshrl.u32 %v484, 4
    %v486 = vand.u32 %v484, 15
    %v487 = vsub.s32 0, %v486
    %v488 = vsel %vm482, %v487, %v486
    %vm489 = vcmp.lt.s32.totalorder %v377, 0
    %v490 = vsub.s32 0, %v377
    %v491 = vsel %vm489, %v490, %v377
    %v492 = vshrl.u32 %v491, 4
    %v493 = vand.u32 %v491, 15
    %v494 = vsub.s32 0, %v493
    %v495 = vsel %vm489, %v494, %v493
    %vm496 = vcmp.lt.s32.totalorder %v378, 0
    %v497 = vsub.s32 0, %v378
    %v498 = vsel %vm496, %v497, %v378
    %v499 = vshrl.u32 %v498, 4
    %v500 = vand.u32 %v498, 15
    %v501 = vsub.s32 0, %v500
    %v502 = vsel %vm496, %v501, %v500
    %vm503 = vcmp.lt.s32.totalorder %v379, 0
    %v504 = vsub.s32 0, %v379
    %v505 = vsel %vm503, %v504, %v379
    %v506 = vshrl.u32 %v505, 4
    %v507 = vand.u32 %v505, 15
    %v508 = vsub.s32 0, %v507
    %v509 = vsel %vm503, %v508, %v507
    %vm510 = vcmp.lt.s32.totalorder %v380, 0
    %v511 = vsub.s32 0, %v380
    %v512 = vsel %vm510, %v511, %v380
    %v513 = vshrl.u32 %v512, 4
    %v514 = vand.u32 %v512, 15
    %v515 = vsub.s32 0, %v514
    %v516 = vsel %vm510, %v515, %v514
    %vm517 = vcmp.lt.s32.totalorder %v381, 0
    %v518 = vsub.s32 0, %v381
    %v519 = vsel %vm517, %v518, %v381
    %v520 = vshrl.u32 %v519, 4
    %v521 = vand.u32 %v519, 15
    %v522 = vsub.s32 0, %v521
    %v523 = vsel %vm517, %v522, %v521
    %vm524 = vcmp.lt.s32.totalorder %v382, 0
    %v525 = vsub.s32 0, %v382
    %v526 = vsel %vm524, %v525, %v382
    %v527 = vshrl.u32 %v526, 4
    %v528 = vand.u32 %v526, 15
    %v529 = vsub.s32 0, %v528
    %v530 = vsel %vm524, %v529, %v528
    %vm531 = vcmp.lt.s32.totalorder %v383, 0
    %v532 = vsub.s32 0, %v383
    %v533 = vsel %vm531, %v532, %v383
    %v534 = vshrl.u32 %v533, 4
    %v535 = vand.u32 %v533, 15
    %v536 = vsub.s32 0, %v535
    %v537 = vsel %vm531, %v536, %v535
    %vm538 = vcmp.lt.s32.totalorder %v384, 0
    %v539 = vsub.s32 0, %v384
    %v540 = vsel %vm538, %v539, %v384
    %v541 = vshrl.u32 %v540, 4
    %v542 = vand.u32 %v540, 15
    %v543 = vsub.s32 0, %v542
    %v544 = vsel %vm538, %v543, %v542
    %vm545 = vcmp.ne.s32.totalorder %v439, 0
    %vm546 = vcmp.ne.s32.totalorder %v446, 0
    %vm547 = vcmp.ne.s32.totalorder %v453, 0
    %vm548 = vcmp.ne.s32.totalorder %v460, 0
    %vm549 = vcmp.ne.s32.totalorder %v467, 0
    %vm550 = vcmp.ne.s32.totalorder %v474, 0
    %vm551 = vcmp.ne.s32.totalorder %v481, 0
    %vm552 = vcmp.ne.s32.totalorder %v488, 0
    %vm553 = vcmp.ne.s32.totalorder %v495, 0
    %vm554 = vcmp.ne.s32.totalorder %v502, 0
    %vm555 = vcmp.ne.s32.totalorder %v509, 0
    %vm556 = vcmp.ne.s32.totalorder %v516, 0
    %vm557 = vcmp.ne.s32.totalorder %v523, 0
    %vm558 = vcmp.ne.s32.totalorder %v530, 0
    %vm559 = vcmp.ne.s32.totalorder %v537, 0
    %vm560 = vcmp.ne.s32.totalorder %v544, 0
    %vm561 = vcmp.lt.s32.totalorder %v439, 0
    %vm562 = vcmp.lt.s32.totalorder %v446, 0
    %vm563 = vcmp.lt.s32.totalorder %v453, 0
    %vm564 = vcmp.lt.s32.totalorder %v460, 0
    %vm565 = vcmp.lt.s32.totalorder %v467, 0
    %vm566 = vcmp.lt.s32.totalorder %v474, 0
    %vm567 = vcmp.lt.s32.totalorder %v481, 0
    %vm568 = vcmp.lt.s32.totalorder %v488, 0
    %vm569 = vcmp.lt.s32.totalorder %v495, 0
    %vm570 = vcmp.lt.s32.totalorder %v502, 0
    %vm571 = vcmp.lt.s32.totalorder %v509, 0
    %vm572 = vcmp.lt.s32.totalorder %v516, 0
    %vm573 = vcmp.lt.s32.totalorder %v523, 0
    %vm574 = vcmp.lt.s32.totalorder %v530, 0
    %vm575 = vcmp.lt.s32.totalorder %v537, 0
    %vm576 = vcmp.lt.s32.totalorder %v544, 0
    %vm577 = vmand %vm561, %vm545
    %vm578 = vmand %vm562, %vm546
    %vm579 = vmand %vm563, %vm547
    %vm580 = vmand %vm564, %vm548
    %vm581 = vmand %vm565, %vm549
    %vm582 = vmand %vm566, %vm550
    %vm583 = vmand %vm567, %vm551
    %vm584 = vmand %vm568, %vm552
    %vm585 = vmand %vm569, %vm553
    %vm586 = vmand %vm570, %vm554
    %vm587 = vmand %vm571, %vm555
    %vm588 = vmand %vm572, %vm556
    %vm589 = vmand %vm573, %vm557
    %vm590 = vmand %vm574, %vm558
    %vm591 = vmand %vm575, %vm559
    %vm592 = vmand %vm576, %vm560
    %v593 = vadd.s32 %v439, 16
    %v594 = vadd.s32 %v446, 16
    %v595 = vadd.s32 %v453, 16
    %v596 = vadd.s32 %v460, 16
    %v597 = vadd.s32 %v467, 16
    %v598 = vadd.s32 %v474, 16
    %v599 = vadd.s32 %v481, 16
    %v600 = vadd.s32 %v488, 16
    %v601 = vadd.s32 %v495, 16
    %v602 = vadd.s32 %v502, 16
    %v603 = vadd.s32 %v509, 16
    %v604 = vadd.s32 %v516, 16
    %v605 = vadd.s32 %v523, 16
    %v606 = vadd.s32 %v530, 16
    %v607 = vadd.s32 %v537, 16
    %v608 = vadd.s32 %v544, 16
    %v609 = vsel %vm577, %v593, %v439
    %v610 = vsel %vm578, %v594, %v446
    %v611 = vsel %vm579, %v595, %v453
    %v612 = vsel %vm580, %v596, %v460
    %v613 = vsel %vm581, %v597, %v467
    %v614 = vsel %vm582, %v598, %v474
    %v615 = vsel %vm583, %v599, %v481
    %v616 = vsel %vm584, %v600, %v488
    %v617 = vsel %vm585, %v601, %v495
    %v618 = vsel %vm586, %v602, %v502
    %v619 = vsel %vm587, %v603, %v509
    %v620 = vsel %vm588, %v604, %v516
    %v621 = vsel %vm589, %v605, %v523
    %v622 = vsel %vm590, %v606, %v530
    %v623 = vsel %vm591, %v607, %v537
    %v624 = vsel %vm592, %v608, %v544
    %vm625 = vcmp.lt.s32.totalorder %v609, 4
    %vm626 = vcmp.lt.s32.totalorder %v610, 4
    %vm627 = vcmp.lt.s32.totalorder %v611, 4
    %vm628 = vcmp.lt.s32.totalorder %v612, 4
    %vm629 = vcmp.lt.s32.totalorder %v613, 4
    %vm630 = vcmp.lt.s32.totalorder %v614, 4
    %vm631 = vcmp.lt.s32.totalorder %v615, 4
    %vm632 = vcmp.lt.s32.totalorder %v616, 4
    %vm633 = vcmp.lt.s32.totalorder %v617, 4
    %vm634 = vcmp.lt.s32.totalorder %v618, 4
    %vm635 = vcmp.lt.s32.totalorder %v619, 4
    %vm636 = vcmp.lt.s32.totalorder %v620, 4
    %vm637 = vcmp.lt.s32.totalorder %v621, 4
    %vm638 = vcmp.lt.s32.totalorder %v622, 4
    %vm639 = vcmp.lt.s32.totalorder %v623, 4
    %vm640 = vcmp.lt.s32.totalorder %v624, 4
    %v641 = vsel %vm625, 1, 0
    %v642 = vsel %vm626, 1, 0
    %v643 = vsel %vm627, 1, 0
    %v644 = vsel %vm628, 1, 0
    %v645 = vsel %vm629, 1, 0
    %v646 = vsel %vm630, 1, 0
    %v647 = vsel %vm631, 1, 0
    %v648 = vsel %vm632, 1, 0
    %v649 = vsel %vm633, 1, 0
    %v650 = vsel %vm634, 1, 0
    %v651 = vsel %vm635, 1, 0
    %v652 = vsel %vm636, 1, 0
    %v653 = vsel %vm637, 1, 0
    %v654 = vsel %vm638, 1, 0
    %v655 = vsel %vm639, 1, 0
    %v656 = vsel %vm640, 1, 0
    %v657 = vcvt.s32.f32 %v641
    %v658 = vcvt.s32.f32 %v642
    %v659 = vcvt.s32.f32 %v643
    %v660 = vcvt.s32.f32 %v644
    %v661 = vcvt.s32.f32 %v645
    %v662 = vcvt.s32.f32 %v646
    %v663 = vcvt.s32.f32 %v647
    %v664 = vcvt.s32.f32 %v648
    %v665 = vcvt.s32.f32 %v649
    %v666 = vcvt.s32.f32 %v650
    %v667 = vcvt.s32.f32 %v651
    %v668 = vcvt.s32.f32 %v652
    %v669 = vcvt.s32.f32 %v653
    %v670 = vcvt.s32.f32 %v654
    %v671 = vcvt.s32.f32 %v655
    %v672 = vcvt.s32.f32 %v656
    %vm673 = vcmp.lt.s32.totalorder %v369, 0
    %v674 = vsub.s32 0, %v369
    %v675 = vsel %vm673, %v674, %v369
    %v676 = vshrl.u32 %v675, 2
    %v677 = vand.u32 %v675, 3
    %v678 = vsub.s32 0, %v677
    %v679 = vsel %vm673, %v678, %v677
    %vm680 = vcmp.lt.s32.totalorder %v370, 0
    %v681 = vsub.s32 0, %v370
    %v682 = vsel %vm680, %v681, %v370
    %v683 = vshrl.u32 %v682, 2
    %v684 = vand.u32 %v682, 3
    %v685 = vsub.s32 0, %v684
    %v686 = vsel %vm680, %v685, %v684
    %vm687 = vcmp.lt.s32.totalorder %v371, 0
    %v688 = vsub.s32 0, %v371
    %v689 = vsel %vm687, %v688, %v371
    %v690 = vshrl.u32 %v689, 2
    %v691 = vand.u32 %v689, 3
    %v692 = vsub.s32 0, %v691
    %v693 = vsel %vm687, %v692, %v691
    %vm694 = vcmp.lt.s32.totalorder %v372, 0
    %v695 = vsub.s32 0, %v372
    %v696 = vsel %vm694, %v695, %v372
    %v697 = vshrl.u32 %v696, 2
    %v698 = vand.u32 %v696, 3
    %v699 = vsub.s32 0, %v698
    %v700 = vsel %vm694, %v699, %v698
    %vm701 = vcmp.lt.s32.totalorder %v373, 0
    %v702 = vsub.s32 0, %v373
    %v703 = vsel %vm701, %v702, %v373
    %v704 = vshrl.u32 %v703, 2
    %v705 = vand.u32 %v703, 3
    %v706 = vsub.s32 0, %v705
    %v707 = vsel %vm701, %v706, %v705
    %vm708 = vcmp.lt.s32.totalorder %v374, 0
    %v709 = vsub.s32 0, %v374
    %v710 = vsel %vm708, %v709, %v374
    %v711 = vshrl.u32 %v710, 2
    %v712 = vand.u32 %v710, 3
    %v713 = vsub.s32 0, %v712
    %v714 = vsel %vm708, %v713, %v712
    %vm715 = vcmp.lt.s32.totalorder %v375, 0
    %v716 = vsub.s32 0, %v375
    %v717 = vsel %vm715, %v716, %v375
    %v718 = vshrl.u32 %v717, 2
    %v719 = vand.u32 %v717, 3
    %v720 = vsub.s32 0, %v719
    %v721 = vsel %vm715, %v720, %v719
    %vm722 = vcmp.lt.s32.totalorder %v376, 0
    %v723 = vsub.s32 0, %v376
    %v724 = vsel %vm722, %v723, %v376
    %v725 = vshrl.u32 %v724, 2
    %v726 = vand.u32 %v724, 3
    %v727 = vsub.s32 0, %v726
    %v728 = vsel %vm722, %v727, %v726
    %vm729 = vcmp.lt.s32.totalorder %v377, 0
    %v730 = vsub.s32 0, %v377
    %v731 = vsel %vm729, %v730, %v377
    %v732 = vshrl.u32 %v731, 2
    %v733 = vand.u32 %v731, 3
    %v734 = vsub.s32 0, %v733
    %v735 = vsel %vm729, %v734, %v733
    %vm736 = vcmp.lt.s32.totalorder %v378, 0
    %v737 = vsub.s32 0, %v378
    %v738 = vsel %vm736, %v737, %v378
    %v739 = vshrl.u32 %v738, 2
    %v740 = vand.u32 %v738, 3
    %v741 = vsub.s32 0, %v740
    %v742 = vsel %vm736, %v741, %v740
    %vm743 = vcmp.lt.s32.totalorder %v379, 0
    %v744 = vsub.s32 0, %v379
    %v745 = vsel %vm743, %v744, %v379
    %v746 = vshrl.u32 %v745, 2
    %v747 = vand.u32 %v745, 3
    %v748 = vsub.s32 0, %v747
    %v749 = vsel %vm743, %v748, %v747
    %vm750 = vcmp.lt.s32.totalorder %v380, 0
    %v751 = vsub.s32 0, %v380
    %v752 = vsel %vm750, %v751, %v380
    %v753 = vshrl.u32 %v752, 2
    %v754 = vand.u32 %v752, 3
    %v755 = vsub.s32 0, %v754
    %v756 = vsel %vm750, %v755, %v754
    %vm757 = vcmp.lt.s32.totalorder %v381, 0
    %v758 = vsub.s32 0, %v381
    %v759 = vsel %vm757, %v758, %v381
    %v760 = vshrl.u32 %v759, 2
    %v761 = vand.u32 %v759, 3
    %v762 = vsub.s32 0, %v761
    %v763 = vsel %vm757, %v762, %v761
    %vm764 = vcmp.lt.s32.totalorder %v382, 0
    %v765 = vsub.s32 0, %v382
    %v766 = vsel %vm764, %v765, %v382
    %v767 = vshrl.u32 %v766, 2
    %v768 = vand.u32 %v766, 3
    %v769 = vsub.s32 0, %v768
    %v770 = vsel %vm764, %v769, %v768
    %vm771 = vcmp.lt.s32.totalorder %v383, 0
    %v772 = vsub.s32 0, %v383
    %v773 = vsel %vm771, %v772, %v383
    %v774 = vshrl.u32 %v773, 2
    %v775 = vand.u32 %v773, 3
    %v776 = vsub.s32 0, %v775
    %v777 = vsel %vm771, %v776, %v775
    %vm778 = vcmp.lt.s32.totalorder %v384, 0
    %v779 = vsub.s32 0, %v384
    %v780 = vsel %vm778, %v779, %v384
    %v781 = vshrl.u32 %v780, 2
    %v782 = vand.u32 %v780, 3
    %v783 = vsub.s32 0, %v782
    %v784 = vsel %vm778, %v783, %v782
    %vm785 = vcmp.ne.s32.totalorder %v679, 0
    %vm786 = vcmp.ne.s32.totalorder %v686, 0
    %vm787 = vcmp.ne.s32.totalorder %v693, 0
    %vm788 = vcmp.ne.s32.totalorder %v700, 0
    %vm789 = vcmp.ne.s32.totalorder %v707, 0
    %vm790 = vcmp.ne.s32.totalorder %v714, 0
    %vm791 = vcmp.ne.s32.totalorder %v721, 0
    %vm792 = vcmp.ne.s32.totalorder %v728, 0
    %vm793 = vcmp.ne.s32.totalorder %v735, 0
    %vm794 = vcmp.ne.s32.totalorder %v742, 0
    %vm795 = vcmp.ne.s32.totalorder %v749, 0
    %vm796 = vcmp.ne.s32.totalorder %v756, 0
    %vm797 = vcmp.ne.s32.totalorder %v763, 0
    %vm798 = vcmp.ne.s32.totalorder %v770, 0
    %vm799 = vcmp.ne.s32.totalorder %v777, 0
    %vm800 = vcmp.ne.s32.totalorder %v784, 0
    %vm801 = vcmp.lt.s32.totalorder %v679, 0
    %vm802 = vcmp.lt.s32.totalorder %v686, 0
    %vm803 = vcmp.lt.s32.totalorder %v693, 0
    %vm804 = vcmp.lt.s32.totalorder %v700, 0
    %vm805 = vcmp.lt.s32.totalorder %v707, 0
    %vm806 = vcmp.lt.s32.totalorder %v714, 0
    %vm807 = vcmp.lt.s32.totalorder %v721, 0
    %vm808 = vcmp.lt.s32.totalorder %v728, 0
    %vm809 = vcmp.lt.s32.totalorder %v735, 0
    %vm810 = vcmp.lt.s32.totalorder %v742, 0
    %vm811 = vcmp.lt.s32.totalorder %v749, 0
    %vm812 = vcmp.lt.s32.totalorder %v756, 0
    %vm813 = vcmp.lt.s32.totalorder %v763, 0
    %vm814 = vcmp.lt.s32.totalorder %v770, 0
    %vm815 = vcmp.lt.s32.totalorder %v777, 0
    %vm816 = vcmp.lt.s32.totalorder %v784, 0
    %vm817 = vmand %vm801, %vm785
    %vm818 = vmand %vm802, %vm786
    %vm819 = vmand %vm803, %vm787
    %vm820 = vmand %vm804, %vm788
    %vm821 = vmand %vm805, %vm789
    %vm822 = vmand %vm806, %vm790
    %vm823 = vmand %vm807, %vm791
    %vm824 = vmand %vm808, %vm792
    %vm825 = vmand %vm809, %vm793
    %vm826 = vmand %vm810, %vm794
    %vm827 = vmand %vm811, %vm795
    %vm828 = vmand %vm812, %vm796
    %vm829 = vmand %vm813, %vm797
    %vm830 = vmand %vm814, %vm798
    %vm831 = vmand %vm815, %vm799
    %vm832 = vmand %vm816, %vm800
    %v833 = vadd.s32 %v679, 4
    %v834 = vadd.s32 %v686, 4
    %v835 = vadd.s32 %v693, 4
    %v836 = vadd.s32 %v700, 4
    %v837 = vadd.s32 %v707, 4
    %v838 = vadd.s32 %v714, 4
    %v839 = vadd.s32 %v721, 4
    %v840 = vadd.s32 %v728, 4
    %v841 = vadd.s32 %v735, 4
    %v842 = vadd.s32 %v742, 4
    %v843 = vadd.s32 %v749, 4
    %v844 = vadd.s32 %v756, 4
    %v845 = vadd.s32 %v763, 4
    %v846 = vadd.s32 %v770, 4
    %v847 = vadd.s32 %v777, 4
    %v848 = vadd.s32 %v784, 4
    %v849 = vsel %vm817, %v833, %v679
    %v850 = vsel %vm818, %v834, %v686
    %v851 = vsel %vm819, %v835, %v693
    %v852 = vsel %vm820, %v836, %v700
    %v853 = vsel %vm821, %v837, %v707
    %v854 = vsel %vm822, %v838, %v714
    %v855 = vsel %vm823, %v839, %v721
    %v856 = vsel %vm824, %v840, %v728
    %v857 = vsel %vm825, %v841, %v735
    %v858 = vsel %vm826, %v842, %v742
    %v859 = vsel %vm827, %v843, %v749
    %v860 = vsel %vm828, %v844, %v756
    %v861 = vsel %vm829, %v845, %v763
    %v862 = vsel %vm830, %v846, %v770
    %v863 = vsel %vm831, %v847, %v777
    %v864 = vsel %vm832, %v848, %v784
    %vm865 = vcmp.eq.s32.totalorder %v849, 0
    %vm866 = vcmp.eq.s32.totalorder %v850, 0
    %vm867 = vcmp.eq.s32.totalorder %v851, 0
    %vm868 = vcmp.eq.s32.totalorder %v852, 0
    %vm869 = vcmp.eq.s32.totalorder %v853, 0
    %vm870 = vcmp.eq.s32.totalorder %v854, 0
    %vm871 = vcmp.eq.s32.totalorder %v855, 0
    %vm872 = vcmp.eq.s32.totalorder %v856, 0
    %vm873 = vcmp.eq.s32.totalorder %v857, 0
    %vm874 = vcmp.eq.s32.totalorder %v858, 0
    %vm875 = vcmp.eq.s32.totalorder %v859, 0
    %vm876 = vcmp.eq.s32.totalorder %v860, 0
    %vm877 = vcmp.eq.s32.totalorder %v861, 0
    %vm878 = vcmp.eq.s32.totalorder %v862, 0
    %vm879 = vcmp.eq.s32.totalorder %v863, 0
    %vm880 = vcmp.eq.s32.totalorder %v864, 0
    %v881 = vsel %vm865, 1, 0
    %v882 = vsel %vm866, 1, 0
    %v883 = vsel %vm867, 1, 0
    %v884 = vsel %vm868, 1, 0
    %v885 = vsel %vm869, 1, 0
    %v886 = vsel %vm870, 1, 0
    %v887 = vsel %vm871, 1, 0
    %v888 = vsel %vm872, 1, 0
    %v889 = vsel %vm873, 1, 0
    %v890 = vsel %vm874, 1, 0
    %v891 = vsel %vm875, 1, 0
    %v892 = vsel %vm876, 1, 0
    %v893 = vsel %vm877, 1, 0
    %v894 = vsel %vm878, 1, 0
    %v895 = vsel %vm879, 1, 0
    %v896 = vsel %vm880, 1, 0
    %v897 = vcvt.s32.f32 %v881
    %v898 = vcvt.s32.f32 %v882
    %v899 = vcvt.s32.f32 %v883
    %v900 = vcvt.s32.f32 %v884
    %v901 = vcvt.s32.f32 %v885
    %v902 = vcvt.s32.f32 %v886
    %v903 = vcvt.s32.f32 %v887
    %v904 = vcvt.s32.f32 %v888
    %v905 = vcvt.s32.f32 %v889
    %v906 = vcvt.s32.f32 %v890
    %v907 = vcvt.s32.f32 %v891
    %v908 = vcvt.s32.f32 %v892
    %v909 = vcvt.s32.f32 %v893
    %v910 = vcvt.s32.f32 %v894
    %v911 = vcvt.s32.f32 %v895
    %v912 = vcvt.s32.f32 %v896
    %v913 = vld [vmem:[%s6] sm:$0x1]
    %v915 = vperm.slane %v913, 0
    %v917 = vmul.f32 %v417, %v915
    %v918 = vmul.f32 %v418, %v915
    %v919 = vmul.f32 %v419, %v915
    %v920 = vmul.f32 %v420, %v915
    %v921 = vmul.f32 %v421, %v915
    %v922 = vmul.f32 %v422, %v915
    %v923 = vmul.f32 %v423, %v915
    %v924 = vmul.f32 %v424, %v915
    %v925 = vmul.f32 %v425, %v915
    %v926 = vmul.f32 %v426, %v915
    %v927 = vmul.f32 %v427, %v915
    %v928 = vmul.f32 %v428, %v915
    %v929 = vmul.f32 %v429, %v915
    %v930 = vmul.f32 %v430, %v915
    %v931 = vmul.f32 %v431, %v915
    %v932 = vmul.f32 %v432, %v915
    %v933 = vld [vmem:[%s7] sm:$0x1]
    %v935 = vperm.slane %v933, 0
    %v937 = vmul.f32 %v657, %v935
    %v938 = vmul.f32 %v658, %v935
    %v939 = vmul.f32 %v659, %v935
    %v940 = vmul.f32 %v660, %v935
    %v941 = vmul.f32 %v661, %v935
    %v942 = vmul.f32 %v662, %v935
    %v943 = vmul.f32 %v663, %v935
    %v944 = vmul.f32 %v664, %v935
    %v945 = vmul.f32 %v665, %v935
    %v946 = vmul.f32 %v666, %v935
    %v947 = vmul.f32 %v667, %v935
    %v948 = vmul.f32 %v668, %v935
    %v949 = vmul.f32 %v669, %v935
    %v950 = vmul.f32 %v670, %v935
    %v951 = vmul.f32 %v671, %v935
    %v952 = vmul.f32 %v672, %v935
    %v953 = vadd.f32 %v917, %v937
    %v954 = vadd.f32 %v918, %v938
    %v955 = vadd.f32 %v919, %v939
    %v956 = vadd.f32 %v920, %v940
    %v957 = vadd.f32 %v921, %v941
    %v958 = vadd.f32 %v922, %v942
    %v959 = vadd.f32 %v923, %v943
    %v960 = vadd.f32 %v924, %v944
    %v961 = vadd.f32 %v925, %v945
    %v962 = vadd.f32 %v926, %v946
    %v963 = vadd.f32 %v927, %v947
    %v964 = vadd.f32 %v928, %v948
    %v965 = vadd.f32 %v929, %v949
    %v966 = vadd.f32 %v930, %v950
    %v967 = vadd.f32 %v931, %v951
    %v968 = vadd.f32 %v932, %v952
    %v969 = vld [vmem:[%s8] sm:$0x1]
    %v971 = vperm.slane %v969, 0
    %v973 = vmul.f32 %v897, %v971
    %v974 = vmul.f32 %v898, %v971
    %v975 = vmul.f32 %v899, %v971
    %v976 = vmul.f32 %v900, %v971
    %v977 = vmul.f32 %v901, %v971
    %v978 = vmul.f32 %v902, %v971
    %v979 = vmul.f32 %v903, %v971
    %v980 = vmul.f32 %v904, %v971
    %v981 = vmul.f32 %v905, %v971
    %v982 = vmul.f32 %v906, %v971
    %v983 = vmul.f32 %v907, %v971
    %v984 = vmul.f32 %v908, %v971
    %v985 = vmul.f32 %v909, %v971
    %v986 = vmul.f32 %v910, %v971
    %v987 = vmul.f32 %v911, %v971
    %v988 = vmul.f32 %v912, %v971
    %v989 = vadd.f32 %v953, %v973
    %v990 = vadd.f32 %v954, %v974
    %v991 = vadd.f32 %v955, %v975
    %v992 = vadd.f32 %v956, %v976
    %v993 = vadd.f32 %v957, %v977
    %v994 = vadd.f32 %v958, %v978
    %v995 = vadd.f32 %v959, %v979
    %v996 = vadd.f32 %v960, %v980
    %v997 = vadd.f32 %v961, %v981
    %v998 = vadd.f32 %v962, %v982
    %v999 = vadd.f32 %v963, %v983
    %v1000 = vadd.f32 %v964, %v984
    %v1001 = vadd.f32 %v965, %v985
    %v1002 = vadd.f32 %v966, %v986
    %v1003 = vadd.f32 %v967, %v987
    %v1004 = vadd.f32 %v968, %v988
    %vm1005 = vcmp.gt.f32.partialorder %v989, 0.0
    %vm1006 = vcmp.gt.f32.partialorder %v990, 0.0
    %vm1007 = vcmp.gt.f32.partialorder %v991, 0.0
    %vm1008 = vcmp.gt.f32.partialorder %v992, 0.0
    %vm1009 = vcmp.gt.f32.partialorder %v993, 0.0
    %vm1010 = vcmp.gt.f32.partialorder %v994, 0.0
    %vm1011 = vcmp.gt.f32.partialorder %v995, 0.0
    %vm1012 = vcmp.gt.f32.partialorder %v996, 0.0
    %vm1013 = vcmp.gt.f32.partialorder %v997, 0.0
    %vm1014 = vcmp.gt.f32.partialorder %v998, 0.0
    %vm1015 = vcmp.gt.f32.partialorder %v999, 0.0
    %vm1016 = vcmp.gt.f32.partialorder %v1000, 0.0
    %vm1017 = vcmp.gt.f32.partialorder %v1001, 0.0
    %vm1018 = vcmp.gt.f32.partialorder %v1002, 0.0
    %vm1019 = vcmp.gt.f32.partialorder %v1003, 0.0
    %vm1020 = vcmp.gt.f32.partialorder %v1004, 0.0
    %v1021 = vsel %vm1005, 0.0, %v142
    %v1022 = vsel %vm1006, 0.0, %v143
    %v1023 = vsel %vm1007, 0.0, %v144
    %v1024 = vsel %vm1008, 0.0, %v145
    %v1025 = vsel %vm1009, 0.0, %v146
    %v1026 = vsel %vm1010, 0.0, %v147
    %v1027 = vsel %vm1011, 0.0, %v148
    %v1028 = vsel %vm1012, 0.0, %v149
    %v1029 = vsel %vm1013, 0.0, %v150
    %v1030 = vsel %vm1014, 0.0, %v151
    %v1031 = vsel %vm1015, 0.0, %v152
    %v1032 = vsel %vm1016, 0.0, %v153
    %v1033 = vsel %vm1017, 0.0, %v154
    %v1034 = vsel %vm1018, 0.0, %v155
    %v1035 = vsel %vm1019, 0.0, %v156
    %v1036 = vsel %vm1020, 0.0, %v157
    %v1037 = vpack.c.bf16 %v1022, %v1021
    %v1038 = vpack.c.bf16 %v1024, %v1023
    %v1039 = vpack.c.bf16 %v1026, %v1025
    %v1040 = vpack.c.bf16 %v1028, %v1027
    %v1041 = vpack.c.bf16 %v1030, %v1029
    %v1042 = vpack.c.bf16 %v1032, %v1031
    %v1043 = vpack.c.bf16 %v1034, %v1033
    %v1044 = vpack.c.bf16 %v1036, %v1035
    %v1045 = vld [vmem:[%s1] sm:$0xf]
    %v1046 = vld [vmem:[%s1 + $0x4] sm:$0xf]
    %v1047 = vld [vmem:[%s1 + $0x8] sm:$0xf]
    %v1048 = vld [vmem:[%s1 + $0xc] sm:$0xf]
    %v1049 = vld [vmem:[%s1 + $0x10] sm:$0xf]
    %v1050 = vld [vmem:[%s1 + $0x14] sm:$0xf]
    %v1051 = vld [vmem:[%s1 + $0x18] sm:$0xf]
    %v1052 = vld [vmem:[%s1 + $0x1c] sm:$0xf]
    %v1053 = vld [vmem:[%s1 + $0x20] sm:$0xf]
    %v1054 = vld [vmem:[%s1 + $0x24] sm:$0xf]
    %v1055 = vld [vmem:[%s1 + $0x28] sm:$0xf]
    %v1056 = vld [vmem:[%s1 + $0x2c] sm:$0xf]
    %v1057 = vld [vmem:[%s1 + $0x30] sm:$0xf]
    %v1058 = vld [vmem:[%s1 + $0x34] sm:$0x3]
    %v1059 = vld [vmem:[%s2] sm:$0x1]
    %v1061 = vperm.slane %v1059, 0
    %v1077 = vunpack.c.l.b16 %v1045
    %v1078 = vunpack.c.l.b16 %v1046
    %v1079 = vunpack.c.l.b16 %v1047
    %v1080 = vunpack.c.l.b16 %v1048
    %v1081 = vunpack.c.l.b16 %v1049
    %v1082 = vunpack.c.l.b16 %v1050
    %v1083 = vunpack.c.l.b16 %v1051
    %v1084 = vunpack.c.l.b16 %v1052
    %v1085 = vunpack.c.l.b16 %v1053
    %v1086 = vunpack.c.l.b16 %v1054
    %v1087 = vunpack.c.l.b16 %v1055
    %v1088 = vunpack.c.l.b16 %v1056
    %v1089 = vunpack.c.l.b16 %v1057
    %v1090 = vunpack.c.l.b16 %v1058
    %v1091 = vpack.c.b16 %v1078, %v1077
    %v1092 = vpack.c.b16 %v1080, %v1079
    %v1093 = vpack.c.b16 %v1082, %v1081
    %v1094 = vpack.c.b16 %v1084, %v1083
    %v1095 = vpack.c.b16 %v1086, %v1085
    %v1096 = vpack.c.b16 %v1088, %v1087
    %v1097 = vpack.c.b16 %v1090, %v1089
    %vm1104 = vcmask 883712
    %v1106 = vsel %vm1104, %v1037, 0
    %v1109 = vsel %vm1104, %v1038, 0
    %v1112 = vsel %vm1104, %v1039, 0
    %v1115 = vsel %vm1104, %v1040, 0
    %v1118 = vsel %vm1104, %v1041, 0
    %v1121 = vsel %vm1104, %v1042, 0
    %v1124 = vsel %vm1104, %v1043, 0
    %v1127 = vsel %vm1104, %v1044, 0
    %vm1129 = vcmask 1045504
    %v1131 = vsel %vm1129, %v1097, 0
    %1133 = vmatpush.bf16.msra.mxu0 0
    %1134 = vmatpush.bf16.msra.mxu0 %v1131
    %1135 = vmatpush.bf16.msra.mxu0 %v1096
    %1136 = vmatpush.bf16.msra.mxu0 %v1095
    %1137 = vmatpush.bf16.msra.mxu0 %v1094
    %1138 = vmatpush.bf16.msra.mxu0 %v1093
    %1139 = vmatpush.bf16.msra.mxu0 %v1092
    %1140 = vmatpush.bf16.msra.mxu0 %v1091
    %1141 = vmatmul.bf16.gmra.mxu0 %v1106
    %v1142 = vpop.f32.mrf.mxu0
    %v1143 = vadd.f32 %v1061, %v1142
    %v1144 = vpop.f32.mrf.mxu0
    %v1145 = vadd.f32 %v1061, %v1144
    %1146 = vmatmul.bf16.gmra.mxu0 %v1109
    %v1147 = vpop.f32.mrf.mxu0
    %v1148 = vadd.f32 %v1061, %v1147
    %v1149 = vpop.f32.mrf.mxu0
    %v1150 = vadd.f32 %v1061, %v1149
    %1151 = vmatmul.bf16.gmra.mxu0 %v1112
    %v1152 = vpop.f32.mrf.mxu0
    %v1153 = vadd.f32 %v1061, %v1152
    %v1154 = vpop.f32.mrf.mxu0
    %v1155 = vadd.f32 %v1061, %v1154
    %1156 = vmatmul.bf16.gmra.mxu0 %v1115
    %v1157 = vpop.f32.mrf.mxu0
    %v1158 = vadd.f32 %v1061, %v1157
    %v1159 = vpop.f32.mrf.mxu0
    %v1160 = vadd.f32 %v1061, %v1159
    %1161 = vmatmul.bf16.gmra.mxu0 %v1118
    %v1162 = vpop.f32.mrf.mxu0
    %v1163 = vadd.f32 %v1061, %v1162
    %v1164 = vpop.f32.mrf.mxu0
    %v1165 = vadd.f32 %v1061, %v1164
    %1166 = vmatmul.bf16.gmra.mxu0 %v1121
    %v1167 = vpop.f32.mrf.mxu0
    %v1168 = vadd.f32 %v1061, %v1167
    %v1169 = vpop.f32.mrf.mxu0
    %v1170 = vadd.f32 %v1061, %v1169
    %1171 = vmatmul.bf16.gmra.mxu0 %v1124
    %v1172 = vpop.f32.mrf.mxu0
    %v1173 = vadd.f32 %v1061, %v1172
    %v1174 = vpop.f32.mrf.mxu0
    %v1175 = vadd.f32 %v1061, %v1174
    %1176 = vmatmul.bf16.gmra.mxu0 %v1127
    %v1177 = vpop.f32.mrf.mxu0
    %v1178 = vadd.f32 %v1061, %v1177
    %v1179 = vpop.f32.mrf.mxu0
    %v1180 = vadd.f32 %v1061, %v1179
    %1181 = vdwg.mxu0
    %v1182 = vpack.c.bf16 %v1143, %v1143
    %v1183 = vpack.c.bf16 %v1145, %v1145
    %v1184 = vpack.c.bf16 %v1148, %v1148
    %v1185 = vpack.c.bf16 %v1150, %v1150
    %v1186 = vpack.c.bf16 %v1153, %v1153
    %v1187 = vpack.c.bf16 %v1155, %v1155
    %v1188 = vpack.c.bf16 %v1158, %v1158
    %v1189 = vpack.c.bf16 %v1160, %v1160
    %v1190 = vpack.c.bf16 %v1163, %v1163
    %v1191 = vpack.c.bf16 %v1165, %v1165
    %v1192 = vpack.c.bf16 %v1168, %v1168
    %v1193 = vpack.c.bf16 %v1170, %v1170
    %v1194 = vpack.c.bf16 %v1173, %v1173
    %v1195 = vpack.c.bf16 %v1175, %v1175
    %v1196 = vpack.c.bf16 %v1178, %v1178
    %v1197 = vpack.c.bf16 %v1180, %v1180
    %1198 = vst [vmem:[#allocation2] sm:$0xf] %v1182
    %1199 = vst [vmem:[#allocation2 + $0x4] sm:$0xf] %v1183
    %1200 = vst [vmem:[#allocation2 + $0x8] sm:$0xf] %v1184
    %1201 = vst [vmem:[#allocation2 + $0xc] sm:$0xf] %v1185
    %1202 = vst [vmem:[#allocation2 + $0x10] sm:$0xf] %v1186
    %1203 = vst [vmem:[#allocation2 + $0x14] sm:$0xf] %v1187
    %1204 = vst [vmem:[#allocation2 + $0x18] sm:$0xf] %v1188
    %1205 = vst [vmem:[#allocation2 + $0x1c] sm:$0xf] %v1189
    %1206 = vst [vmem:[#allocation2 + $0x20] sm:$0xf] %v1190
    %1207 = vst [vmem:[#allocation2 + $0x24] sm:$0xf] %v1191
    %1208 = vst [vmem:[#allocation2 + $0x28] sm:$0xf] %v1192
    %1209 = vst [vmem:[#allocation2 + $0x2c] sm:$0xf] %v1193
    %1210 = vst [vmem:[#allocation2 + $0x30] sm:$0xf] %v1194
    %1211 = vst [vmem:[#allocation2 + $0x34] sm:$0xf] %v1195
    %1212 = vst [vmem:[#allocation2 + $0x38] sm:$0xf] %v1196
    %1213 = vst [vmem:[#allocation2 + $0x3c] sm:$0xf] %v1197
    // Predicated region
    $region38: #{_downsample_forward.3} parent=1 // pred_check
      _
    $region39: #{_downsample_forward.3} parent=1 // pred_check_branch
      %1215 = sbr.rel (0) target = $region41
    $region40: #{_downsample_forward.3} parent=1 // pred_region
      %1217 = vsyncadd [#allocation3], 0
      %s1218 = sshll.u32 [#allocation2], 4
      %s1219 = int_to_ptr.vmem [resolvable:$true] %s1218
      %s1220 = sshll.u32 %s9, 4
      %s1221 = int_to_ptr.hbm [resolvable:$true] %s1220
      %1226 = dma.vmem_to_hbm [thread:$0]  %s1219, 1024, %s1221, [#allocation3], 64, 64, 4
    $region41: #{_downsample_forward.3} parent=1 // pred_fallthru
      _
    // Predicated region
    $region42: #{_downsample_forward.3} parent=1 // pred_check
      _
    $region43: #{_downsample_forward.3} parent=1 // pred_check_branch
      %1228 = sbr.rel (0) target = $region45
    $region44: #{_downsample_forward.3} parent=1 // pred_region
      %1230 = dma.done [#allocation3], 1024
    $region45: #{_downsample_forward.3} parent=1 // pred_fallthru
      _
    %1231 = vsyncpa [#allocation3], 1

</llo_original>
